<compile_context>
chip_gen: v7x
topology: tpu7x:2x2x1
jax: 0.10.0
libtpu: 0.0.40
codegen_flags: <defaults>
</compile_context>

<pallas_src>
import jax
import jax.numpy as jnp
from jax import lax
from jax.experimental import pallas as pl
from jax.experimental.pallas import tpu as pltpu

# Output rescale constants from the PyTorch forward, folded into one FMA:
#   ((sin(z) + 1) / 2) * SCALE + SHIFT == sin(z) * (SCALE/2) + (SCALE/2 + SHIFT)
_SCALE = (1.0 / 2.5 ** 2 - 1.0 / 6.5 ** 2)
_SHIFT = 1.0 / 6.5 ** 2
_A = 0.5 * _SCALE
_C = 0.5 * _SCALE + _SHIFT

_LANE = 128     # TPU lane width; batch tiles are multiples of this.
_SUBLANE = 8    # sublane granularity for the packed-parameter buffer.


def _pack_params(params):
    """Pack [(w, b), ...] into one (R, C) f32 buffer.

    Each layer l occupies rows [off_l, off_l + out_l): columns [0, in_l) hold
    W_l (torch (out, in) layout) and column in_l holds b_l.  Rows per layer are
    padded to a multiple of 8 (sublane-aligned static slices in-kernel) and the
    column count is padded to a multiple of 128.
    """
    C = max(w.shape[1] + 1 for w, _ in params)
    C = pl.cdiv(C, _LANE) * _LANE
    blocks, offsets, shapes, r = [], [], [], 0
    for w, b in params:
        out_l, in_l = w.shape
        aug = jnp.concatenate([w, b.reshape(out_l, 1)], axis=1)  # (out, in+1)
        pad_r = (-out_l) % _SUBLANE
        aug = jnp.pad(aug, ((0, pad_r), (0, C - (in_l + 1))))
        blocks.append(aug)
        offsets.append(r)
        shapes.append((out_l, in_l))
        r += out_l + pad_r
    packed = jnp.concatenate(blocks, axis=0).astype(jnp.float32)  # (R, C)
    return packed, tuple(offsets), tuple(shapes)


def _make_pinn_kernel(shapes, offsets, act_dtype):
    """Kernel: (x_ref (tile, d_in), p_ref (R, C), o_ref (d_out, tile))."""
    n_layers = len(shapes)
    dot_prec = (lax.Precision.HIGHEST
                if act_dtype == jnp.float32 else lax.Precision.DEFAULT)

    def kernel(x_ref, p_ref, o_ref):
        def layer_params(l):
            out_l, in_l = shapes[l]
            r = offsets[l]
            w = p_ref[r:r + out_l, 0:in_l]            # (out_l, in_l)
            b = p_ref[r:r + out_l, in_l:in_l + 1]     # (out_l, 1)
            return w, b

        x = x_ref[...]                                # (tile, d_in), batch on sublanes
        # Layer 0: contract the shared last (feature) dim of W (out, in) and
        # X (tile, in)  ==  W @ Xᵀ  (the standard q·kᵀ MXU pattern).  The
        # result is (out0, tile): batch lands on the lane axis and stays there
        # for every subsequent layer and for the output store.
        w, b = layer_params(0)
        z = lax.dot_general(
            w.astype(act_dtype), x.astype(act_dtype),
            (((1,), (1,)), ((), ())),
            precision=dot_prec,
            preferred_element_type=jnp.float32) + b

        # Remaining layers: sin activation then plain (out, in) @ (in, tile).
        for l in range(1, n_layers):
            h = jnp.sin(z.astype(act_dtype))
            w, b = layer_params(l)
            z = jnp.dot(w.astype(act_dtype), h,
                        precision=dot_prec,
                        preferred_element_type=jnp.float32) + b

        # Final folded affine squash into [1/6.5^2, 1/2.5^2].
        o_ref[...] = (jnp.sin(z) * _A + _C).astype(o_ref.dtype)

    return kernel


def pinn_forward(x, params, *, tile_b=4096, act_dtype=jnp.float32):
    """Run PhysicsInformedNNv forward with a single Pallas kernel.

    x:        (B, layers[0]) float32 — natural PyTorch layout, no pre-transpose.
    params:   list of (w, b); w is (out, in) (torch Linear layout), b is (out, 1).
    tile_b:   target batch tile (rounded to a multiple of 128).
    act_dtype: jnp.float32 (default, bit-accurate vs reference) or jnp.bfloat16
               (packed-VALU sin — large-batch v6e/v7x; looser numerics).
    """
    B, d_in = x.shape
    d_out = params[-1][0].shape[0]

    # ---- batch tile selection -------------------------------------------------
    b_pad_min = pl.cdiv(B, _LANE) * _LANE
    tile = max(_LANE, (min(tile_b, b_pad_min) // _LANE) * _LANE)
    # v7x megacore: keep at least 2 parallel grid steps when the batch allows,
    # so the grid axis can be sharded across both TensorCores.
    if b_pad_min >= 2 * _LANE:
        half = max(_LANE, ((b_pad_min // 2) // _LANE) * _LANE)
        tile = min(tile, half)
    b_pad = pl.cdiv(B, tile) * tile

    # Pad only when the batch is ragged w.r.t. the tile (no unconditional
    # pad+transpose HBM round trip).
    x_in = x if b_pad == B else jnp.pad(x, ((0, b_pad - B), (0, 0)))

    packed, offsets, shapes = _pack_params(params)

    grid = (b_pad // tile,)
    in_specs = [
        pl.BlockSpec((tile, d_in), lambda i: (i, 0)),      # x: batch tiles
        pl.BlockSpec(packed.shape, lambda i: (0, 0)),      # params: grid-invariant
    ]
    out_spec = pl.BlockSpec((d_out, tile), lambda i: (0, i))

    outT = pl.pallas_call(
        _make_pinn_kernel(shapes, offsets, act_dtype),
        out_shape=jax.ShapeDtypeStruct((d_out, b_pad), jnp.float32),
        grid_spec=pltpu.PrefetchScalarGridSpec(
            num_scalar_prefetch=0,
            grid=grid,
            in_specs=in_specs,
            out_specs=out_spec,
        ),
        compiler_params=pltpu.CompilerParams(
            dimension_semantics=("parallel",)
        ),
    )(x_in, packed)

    # Back to (B, d_out).  For d_out == 1 the flip is a pure reshape (no data
    # movement); otherwise fall back to a (small) transpose.
    if d_out == 1:
        return outT.reshape(b_pad, 1)[:B]
    return outT[:, :B].T


def init_params(key, layers):
    """Deterministic parameter init (uniform, PyTorch-Linear-like fan-in bound).

    Weights stored as (out, in) == torch Linear weight layout; biases (out, 1).
    """
    params = []
    sizes = list(zip(layers[:-1], layers[1:]))
    keys = jax.random.split(key, 2 * len(sizes))
    for idx, (fan_in, fan_out) in enumerate(sizes):
        bound = 1.0 / jnp.sqrt(fan_in)
        w = jax.random.uniform(
            keys[2 * idx], (fan_out, fan_in), jnp.float32, -bound, bound
        )
        b = jax.random.uniform(
            keys[2 * idx + 1], (fan_out, 1), jnp.float32, -bound, bound
        )
        params.append((w, b))
    return params


def pinn_reference(x, params):
    """Pure-JAX reference of the PyTorch forward (same matmul precision)."""
    prec = lax.Precision.HIGHEST
    h = x
    for w, b in params[:-1]:
        h = jnp.sin(jnp.dot(h, w.T, precision=prec) + b.T)
    w, b = params[-1]
    z = jnp.dot(h, w.T, precision=prec) + b.T
    return (jnp.sin(z) + 1.0) / 2.0 * _SCALE + _SHIFT


if __name__ == "__main__":
    # layers = [2, 32, 32, 1]: two Basicblocks (Linear+sin) then final Linear.
    layers = [2, 32, 32, 1]
    key = jax.random.PRNGKey(0)
    k_x, k_p, k_x2 = jax.random.split(key, 3)
    params = init_params(k_p, layers)

    # Small ragged batch: padded to one 128-lane tile, grid=(1,).
    x = jax.random.normal(k_x, (16, layers[0]), jnp.float32)
    out = jax.block_until_ready(pinn_forward(x, params))
    ref = pinn_reference(x, params)
    assert out.shape == (16, layers[-1])
    assert jnp.allclose(out, ref, atol=1e-5, rtol=1e-5), "mismatch vs reference (B=16)"

    # Larger ragged batch: exercises the multi-step parallel grid (128-row tiles,
    # grid=(3,)) that v7x shards across its two TensorCores.
    x2 = jax.random.normal(k_x2, (300, layers[0]), jnp.float32)
    out2 = jax.block_until_ready(pinn_forward(x2, params))
    ref2 = pinn_reference(x2, params)
    assert out2.shape == (300, layers[-1])
    assert jnp.allclose(out2, ref2, atol=1e-5, rtol=1e-5), "mismatch vs reference (B=300)"

    print("KERNEL_OK")
</pallas_src>

<mosaic_0001>
module attributes {stable_mosaic.version = 11 : i64} {
  func.func @kernel(%arg0: i32, %arg1: memref<128x2xf32, #tpu.memory_space<vmem>>, %arg2: memref<72x128xf32, #tpu.memory_space<vmem>>, %arg3: memref<1x128xf32, #tpu.memory_space<vmem>>) attributes {dimension_semantics = [#tpu.dimension_semantics<parallel>], iteration_bounds = array<i64: 1>, scalar_prefetch = 0 : i64, scratch_operands = 0 : i64, tpu.core_type = #tpu.core_type<tc>, window_params = [{transform_indices = @transform_0, window_bounds = array<i64: 128, 2>}, {pipeline_mode = #tpu.pipeline_mode<synchronous>, transform_indices = @transform_1, window_bounds = array<i64: 72, 128>}, {transform_indices = @transform_2, window_bounds = array<i64: 1, 128>}]} {
    %c0 = arith.constant 0 : index
    %c0_0 = arith.constant 0 : index
    %0 = vector.load %arg1[%c0, %c0_0] : memref<128x2xf32, #tpu.memory_space<vmem>>, vector<128x2xf32>
    %c0_1 = arith.constant 0 : index
    %c0_2 = arith.constant 0 : index
    %1 = vector.load %arg2[%c0_1, %c0_2] : memref<72x128xf32, #tpu.memory_space<vmem>>, vector<32x2xf32>
    %c0_3 = arith.constant 0 : index
    %c2 = arith.constant 2 : index
    %2 = vector.load %arg2[%c0_3, %c2] : memref<72x128xf32, #tpu.memory_space<vmem>>, vector<32x1xf32>
    %cst = arith.constant dense<0.000000e+00> : vector<32x128xf32>
    %3 = tpu.matmul %1, %0, %cst {dimension_numbers = #tpu.dot_dimension_numbers<[1], [1], [0], [0], [0, 0, 1, 0], [], []>, precision = #tpu.contract_precision<fp32>} : vector<32x2xf32>, vector<128x2xf32>, vector<32x128xf32> -> vector<32x128xf32>
    %4 = vector.broadcast %2 : vector<32x1xf32> to vector<32x128xf32>
    %5 = arith.addf %3, %4 : vector<32x128xf32>
    %6 = math.sin %5 : vector<32x128xf32>
    %c32 = arith.constant 32 : index
    %c0_4 = arith.constant 0 : index
    %7 = vector.load %arg2[%c32, %c0_4] : memref<72x128xf32, #tpu.memory_space<vmem>>, vector<32x32xf32>
    %c32_5 = arith.constant 32 : index
    %c32_6 = arith.constant 32 : index
    %8 = vector.load %arg2[%c32_5, %c32_6] : memref<72x128xf32, #tpu.memory_space<vmem>>, vector<32x1xf32>
    %cst_7 = arith.constant dense<0.000000e+00> : vector<32x128xf32>
    %9 = tpu.matmul %7, %6, %cst_7 {dimension_numbers = #tpu.dot_dimension_numbers<[1], [0], [0], [1], [0, 0, 1, 1], [], []>, precision = #tpu.contract_precision<fp32>} : vector<32x32xf32>, vector<32x128xf32>, vector<32x128xf32> -> vector<32x128xf32>
    %10 = vector.broadcast %8 : vector<32x1xf32> to vector<32x128xf32>
    %11 = arith.addf %9, %10 : vector<32x128xf32>
    %12 = math.sin %11 : vector<32x128xf32>
    %c64 = arith.constant 64 : index
    %c0_8 = arith.constant 0 : index
    %13 = vector.load %arg2[%c64, %c0_8] : memref<72x128xf32, #tpu.memory_space<vmem>>, vector<1x32xf32>
    %c64_9 = arith.constant 64 : index
    %c32_10 = arith.constant 32 : index
    %14 = vector.load %arg2[%c64_9, %c32_10] : memref<72x128xf32, #tpu.memory_space<vmem>>, vector<1x1xf32>
    %cst_11 = arith.constant dense<0.000000e+00> : vector<1x128xf32>
    %15 = tpu.matmul %13, %12, %cst_11 {dimension_numbers = #tpu.dot_dimension_numbers<[1], [0], [0], [1], [0, 0, 1, 1], [], []>, precision = #tpu.contract_precision<fp32>} : vector<1x32xf32>, vector<32x128xf32>, vector<1x128xf32> -> vector<1x128xf32>
    %16 = vector.broadcast %14 : vector<1x1xf32> to vector<1x128xf32>
    %17 = arith.addf %15, %16 : vector<1x128xf32>
    %18 = math.sin %17 : vector<1x128xf32>
    %cst_12 = arith.constant 0.0681656823 : f32
    %19 = vector.broadcast %cst_12 : f32 to vector<1x128xf32>
    %20 = arith.mulf %18, %19 : vector<1x128xf32>
    %cst_13 = arith.constant 0.0918343216 : f32
    %21 = vector.broadcast %cst_13 : f32 to vector<1x128xf32>
    %22 = arith.addf %20, %21 : vector<1x128xf32>
    %c0_14 = arith.constant 0 : index
    %c0_15 = arith.constant 0 : index
    %23 = vector.load %arg3[%c0_14, %c0_15] : memref<1x128xf32, #tpu.memory_space<vmem>>, vector<1x128xf32>
    tpu.vector_store %arg3[%c0_14, %c0_15], %22 {strides = array<i32>} : memref<1x128xf32, #tpu.memory_space<vmem>>, vector<1x128xf32>,
    return
  }
  func.func @transform_0(%arg0: i32) -> (i32, i32) {
    %c0_i32 = arith.constant 0 : i32
    %c0_i32_0 = arith.constant 0 : i32
    return %arg0, %c0_i32 : i32, i32
  }
  func.func @transform_1(%arg0: i32) -> (i32, i32) {
    %c0_i32 = arith.constant 0 : i32
    %c0_i32_0 = arith.constant 0 : i32
    %c0_i32_1 = arith.constant 0 : i32
    return %c0_i32, %c0_i32_0 : i32, i32
  }
  func.func @transform_2(%arg0: i32) -> (i32, i32) {
    %c0_i32 = arith.constant 0 : i32
    %c0_i32_0 = arith.constant 0 : i32
    return %c0_i32, %arg0 : i32, i32
  }
}

</mosaic_0001>

<llo_original>
// kernel: tpu_custom_call.1
$region0: #{tpu_custom_call.1}
  #allocation0 [shape = 'u32[]', space=smem, size = 0x4, offset = 0x4, fixed_abs, tag = 'smem constant byte address 0x4 - core index']
  #allocation1 [shape = 'u32[144,128]{1,0:T(1,128)}', space=vmem, size = 0x12000, scoped, tag = 'internal scratch']
  %s0 = inlined_call_operand.vmem [shape: f32[128,2], index: 0, kind: input, shape index: {}]
  %s1 = inlined_call_operand.vmem [shape: f32[72,128], index: 1, kind: input, shape index: {}]
  %s2 = inlined_call_operand.hbm [shape: f32[1,128], index: 2, kind: output, shape index: {}]
  %s3 = sld [smem:[#allocation0]]
  $region18: #{tpu_custom_call.1} parent=0
    _
  %s5 = ssub.s32 1, %s3
  %s6 = scalar_select 0, %s5, %s3
  $region1: #{tpu_custom_call.1} parent=0
    #allocation2 [shape = 'u8[512]{0}', space=vmem, size = 0x400, scoped, tag = 'output window, operand 0, single buffered']
    #allocation3 [shape = 's32[1]{0}', space=sflag, size = 0x4, scoped, tag = 'scoped memory for tpu_custom_call.1']
    %7 = vsyncpa [#allocation3], 0
    // Predicated region
    $region2: #{tpu_custom_call.1} parent=1 // pred_check
      _
    $region3: #{tpu_custom_call.1} parent=1 // pred_check_branch
      %9 = sbr.rel (0) target = $region5
    $region4: #{tpu_custom_call.1} parent=1 // pred_region
      _
    $region5: #{tpu_custom_call.1} parent=1 // pred_fallthru
      _
    // Predicated region
    $region6: #{tpu_custom_call.1} parent=1 // pred_check
      _
    $region7: #{tpu_custom_call.1} parent=1 // pred_check_branch
      %11 = sbr.rel (0) target = $region9
    $region8: #{tpu_custom_call.1} parent=1 // pred_region
      _
    $region9: #{tpu_custom_call.1} parent=1 // pred_fallthru
      _
    %v12 = vld [vmem:[%s0] sm:$0xff]
    %v13 = vld [vmem:[%s0 + $0x8] sm:$0xff]
    %v14 = vld [vmem:[%s0 + $0x10] sm:$0xff]
    %v15 = vld [vmem:[%s0 + $0x18] sm:$0xff]
    %v16 = vld [vmem:[%s0 + $0x20] sm:$0xff]
    %v17 = vld [vmem:[%s0 + $0x28] sm:$0xff]
    %v18 = vld [vmem:[%s0 + $0x30] sm:$0xff]
    %v19 = vld [vmem:[%s0 + $0x38] sm:$0xff]
    %v20 = vld [vmem:[%s0 + $0x40] sm:$0xff]
    %v21 = vld [vmem:[%s0 + $0x48] sm:$0xff]
    %v22 = vld [vmem:[%s0 + $0x50] sm:$0xff]
    %v23 = vld [vmem:[%s0 + $0x58] sm:$0xff]
    %v24 = vld [vmem:[%s0 + $0x60] sm:$0xff]
    %v25 = vld [vmem:[%s0 + $0x68] sm:$0xff]
    %v26 = vld [vmem:[%s0 + $0x70] sm:$0xff]
    %v27 = vld [vmem:[%s0 + $0x78] sm:$0xff]
    %v28 = vld [vmem:[%s1] sm:$0xff]
    %v29 = vld [vmem:[%s1 + $0x8] sm:$0xff]
    %v30 = vld [vmem:[%s1 + $0x10] sm:$0xff]
    %v31 = vld [vmem:[%s1 + $0x18] sm:$0xff]
    %33 = vset.pattern.permute.xlu0 2
    %34 = vperm.xlu0 %33, %v28
    %v35 = vpop.permute.xlu0 %34
    %38 = vset.pattern.permute.xlu0 2
    %39 = vperm.xlu0 %38, %v29
    %v40 = vpop.permute.xlu0 %39
    %43 = vset.pattern.permute.xlu0 2
    %44 = vperm.xlu0 %43, %v30
    %v45 = vpop.permute.xlu0 %44
    %48 = vset.pattern.permute.xlu0 2
    %49 = vperm.xlu0 %48, %v31
    %v50 = vpop.permute.xlu0 %49
    %vm52 = vcmask 15360
    %v53 = vsel %vm52, %v28, 0
    %v55 = vsel %vm52, %v29, 0
    %v57 = vsel %vm52, %v30, 0
    %v59 = vsel %vm52, %v31, 0
    %v62 = vsel %vm52, %v12, 0
    %v65 = vsel %vm52, %v13, 0
    %v68 = vsel %vm52, %v14, 0
    %v71 = vsel %vm52, %v15, 0
    %v74 = vsel %vm52, %v16, 0
    %v77 = vsel %vm52, %v17, 0
    %v80 = vsel %vm52, %v18, 0
    %v83 = vsel %vm52, %v19, 0
    %v86 = vsel %vm52, %v20, 0
    %v89 = vsel %vm52, %v21, 0
    %v92 = vsel %vm52, %v22, 0
    %v95 = vsel %vm52, %v23, 0
    %v98 = vsel %vm52, %v24, 0
    %v101 = vsel %vm52, %v25, 0
    %v104 = vsel %vm52, %v26, 0
    %v107 = vsel %vm52, %v27, 0
    %109 = vmatprep.subr.mxu0 0.0
    %v110 = vand.u32 %v62, 4294901760
    %111 = vmatpush1.xpose.msra.mxu0 %v110
    %112 = vmatprep.subr.mxu0 0.0
    %v113 = vand.u32 %v65, 4294901760
    %114 = vmatpush1.xpose.msra.mxu0 %v113
    %115 = vmatprep.subr.mxu0 0.0
    %v116 = vand.u32 %v68, 4294901760
    %117 = vmatpush1.xpose.msra.mxu0 %v116
    %118 = vmatprep.subr.mxu0 0.0
    %v119 = vand.u32 %v71, 4294901760
    %120 = vmatpush1.xpose.msra.mxu0 %v119
    %121 = vmatprep.subr.mxu0 0.0
    %v122 = vand.u32 %v74, 4294901760
    %123 = vmatpush1.xpose.msra.mxu0 %v122
    %124 = vmatprep.subr.mxu0 0.0
    %v125 = vand.u32 %v77, 4294901760
    %126 = vmatpush1.xpose.msra.mxu0 %v125
    %127 = vmatprep.subr.mxu0 0.0
    %v128 = vand.u32 %v80, 4294901760
    %129 = vmatpush1.xpose.msra.mxu0 %v128
    %130 = vmatprep.subr.mxu0 0.0
    %v131 = vand.u32 %v83, 4294901760
    %132 = vmatpush1.xpose.msra.mxu0 %v131
    %133 = vmatprep.subr.mxu0 0.0
    %v134 = vand.u32 %v86, 4294901760
    %135 = vmatpush1.xpose.msra.mxu0 %v134
    %136 = vmatprep.subr.mxu0 0.0
    %v137 = vand.u32 %v89, 4294901760
    %138 = vmatpush1.xpose.msra.mxu0 %v137
    %139 = vmatprep.subr.mxu0 0.0
    %v140 = vand.u32 %v92, 4294901760
    %141 = vmatpush1.xpose.msra.mxu0 %v140
    %142 = vmatprep.subr.mxu0 0.0
    %v143 = vand.u32 %v95, 4294901760
    %144 = vmatpush1.xpose.msra.mxu0 %v143
    %145 = vmatprep.subr.mxu0 0.0
    %v146 = vand.u32 %v98, 4294901760
    %147 = vmatpush1.xpose.msra.mxu0 %v146
    %148 = vmatprep.subr.mxu0 0.0
    %v149 = vand.u32 %v101, 4294901760
    %150 = vmatpush1.xpose.msra.mxu0 %v149
    %151 = vmatprep.subr.mxu0 0.0
    %v152 = vand.u32 %v104, 4294901760
    %153 = vmatpush1.xpose.msra.mxu0 %v152
    %154 = vmatprep.subr.mxu0 0.0
    %v155 = vand.u32 %v107, 4294901760
    %156 = vmatpush1.xpose.msra.mxu0 %v155
    %157 = vmatprep.subr.mxu0 0.0
    %158 = vmatpush1.xpose.msra.mxu0 0.0
    %159 = vmatprep.subr.mxu0 0.0
    %160 = vmatpush1.xpose.msra.mxu0 0.0
    %161 = vmatprep.subr.mxu0 0.0
    %162 = vmatpush1.xpose.msra.mxu0 0.0
    %163 = vmatprep.subr.mxu0 0.0
    %164 = vmatpush1.xpose.msra.mxu0 0.0
    %165 = vmatprep.subr.mxu0 0.0
    %166 = vmatpush1.xpose.msra.mxu0 0.0
    %167 = vmatprep.subr.mxu0 0.0
    %168 = vmatpush1.xpose.msra.mxu0 0.0
    %169 = vmatprep.subr.mxu0 0.0
    %170 = vmatpush1.xpose.msra.mxu0 0.0
    %171 = vmatprep.subr.mxu0 0.0
    %172 = vmatpush1.xpose.msra.mxu0 0.0
    %173 = vmatprep.subr.mxu0 0.0
    %174 = vmatpush1.xpose.msra.mxu0 0.0
    %175 = vmatprep.subr.mxu0 0.0
    %176 = vmatpush1.xpose.msra.mxu0 0.0
    %177 = vmatprep.subr.mxu0 0.0
    %178 = vmatpush1.xpose.msra.mxu0 0.0
    %179 = vmatprep.subr.mxu0 0.0
    %180 = vmatpush1.xpose.msra.mxu0 0.0
    %181 = vmatprep.subr.mxu0 0.0
    %182 = vmatpush1.xpose.msra.mxu0 0.0
    %183 = vmatprep.subr.mxu0 0.0
    %184 = vmatpush1.xpose.msra.mxu0 0.0
    %185 = vmatprep.subr.mxu0 0.0
    %186 = vmatpush1.xpose.msra.mxu0 0.0
    %187 = vmatprep.subr.mxu0 0.0
    %188 = vmatpush1.xpose.msra.mxu0 0.0
    %189 = vmatprep.mubr.f32.mxu0 0.0
    %v190 = vand.u32 %v53, 4294901760
    %v191 = vsub.f32 %v53, %v190
    %v192 = vand.u32 %v191, 4294901760
    %v193 = vsub.f32 %v191, %v192
    %v194 = vand.u32 %v193, 4294901760
    %195 = vmatmul.mubr.f32.gmra.mrb[0].mxu0 %v194
    %v196 = vpop.f32.mrb[0].mxu0
    %v197 = vadd.f32 %v35, %v196
    %v198 = vpop.f32.mrb[0].mxu0
    %199 = vmatprep.mubr.f32.mxu0 0.0
    %v200 = vand.u32 %v55, 4294901760
    %v201 = vsub.f32 %v55, %v200
    %v202 = vand.u32 %v201, 4294901760
    %v203 = vsub.f32 %v201, %v202
    %v204 = vand.u32 %v203, 4294901760
    %205 = vmatmul.mubr.f32.gmra.mrb[0].mxu0 %v204
    %v206 = vpop.f32.mrb[0].mxu0
    %v207 = vadd.f32 %v40, %v206
    %v208 = vpop.f32.mrb[0].mxu0
    %209 = vmatprep.mubr.f32.mxu0 0.0
    %v210 = vand.u32 %v57, 4294901760
    %v211 = vsub.f32 %v57, %v210
    %v212 = vand.u32 %v211, 4294901760
    %v213 = vsub.f32 %v211, %v212
    %v214 = vand.u32 %v213, 4294901760
    %215 = vmatmul.mubr.f32.gmra.mrb[0].mxu0 %v214
    %v216 = vpop.f32.mrb[0].mxu0
    %v217 = vadd.f32 %v45, %v216
    %v218 = vpop.f32.mrb[0].mxu0
    %219 = vmatprep.mubr.f32.mxu0 0.0
    %v220 = vand.u32 %v59, 4294901760
    %v221 = vsub.f32 %v59, %v220
    %v222 = vand.u32 %v221, 4294901760
    %v223 = vsub.f32 %v221, %v222
    %v224 = vand.u32 %v223, 4294901760
    %225 = vmatmul.mubr.f32.gmra.mrb[0].mxu0 %v224
    %v226 = vpop.f32.mrb[0].mxu0
    %v227 = vadd.f32 %v50, %v226
    %v228 = vpop.f32.mrb[0].mxu0
    %229 = vdwg.mxu0
    %230 = vmatprep.subr.mxu0 0.0
    %v231 = vand.u32 %v62, 4294901760
    %v232 = vsub.f32 %v62, %v231
    %v233 = vand.u32 %v232, 4294901760
    %v234 = vsub.f32 %v232, %v233
    %v235 = vand.u32 %v234, 4294901760
    %236 = vmatpush1.xpose.msra.mxu0 %v235
    %237 = vmatprep.subr.mxu0 0.0
    %v238 = vand.u32 %v65, 4294901760
    %v239 = vsub.f32 %v65, %v238
    %v240 = vand.u32 %v239, 4294901760
    %v241 = vsub.f32 %v239, %v240
    %v242 = vand.u32 %v241, 4294901760
    %243 = vmatpush1.xpose.msra.mxu0 %v242
    %244 = vmatprep.subr.mxu0 0.0
    %v245 = vand.u32 %v68, 4294901760
    %v246 = vsub.f32 %v68, %v245
    %v247 = vand.u32 %v246, 4294901760
    %v248 = vsub.f32 %v246, %v247
    %v249 = vand.u32 %v248, 4294901760
    %250 = vmatpush1.xpose.msra.mxu0 %v249
    %251 = vmatprep.subr.mxu0 0.0
    %v252 = vand.u32 %v71, 4294901760
    %v253 = vsub.f32 %v71, %v252
    %v254 = vand.u32 %v253, 4294901760
    %v255 = vsub.f32 %v253, %v254
    %v256 = vand.u32 %v255, 4294901760
    %257 = vmatpush1.xpose.msra.mxu0 %v256
    %258 = vmatprep.subr.mxu0 0.0
    %v259 = vand.u32 %v74, 4294901760
    %v260 = vsub.f32 %v74, %v259
    %v261 = vand.u32 %v260, 4294901760
    %v262 = vsub.f32 %v260, %v261
    %v263 = vand.u32 %v262, 4294901760
    %264 = vmatpush1.xpose.msra.mxu0 %v263
    %265 = vmatprep.subr.mxu0 0.0
    %v266 = vand.u32 %v77, 4294901760
    %v267 = vsub.f32 %v77, %v266
    %v268 = vand.u32 %v267, 4294901760
    %v269 = vsub.f32 %v267, %v268
    %v270 = vand.u32 %v269, 4294901760
    %271 = vmatpush1.xpose.msra.mxu0 %v270
    %272 = vmatprep.subr.mxu0 0.0
    %v273 = vand.u32 %v80, 4294901760
    %v274 = vsub.f32 %v80, %v273
    %v275 = vand.u32 %v274, 4294901760
    %v276 = vsub.f32 %v274, %v275
    %v277 = vand.u32 %v276, 4294901760
    %278 = vmatpush1.xpose.msra.mxu0 %v277
    %279 = vmatprep.subr.mxu0 0.0
    %v280 = vand.u32 %v83, 4294901760
    %v281 = vsub.f32 %v83, %v280
    %v282 = vand.u32 %v281, 4294901760
    %v283 = vsub.f32 %v281, %v282
    %v284 = vand.u32 %v283, 4294901760
    %285 = vmatpush1.xpose.msra.mxu0 %v284
    %286 = vmatprep.subr.mxu0 0.0
    %v287 = vand.u32 %v86, 4294901760
    %v288 = vsub.f32 %v86, %v287
    %v289 = vand.u32 %v288, 4294901760
    %v290 = vsub.f32 %v288, %v289
    %v291 = vand.u32 %v290, 4294901760
    %292 = vmatpush1.xpose.msra.mxu0 %v291
    %293 = vmatprep.subr.mxu0 0.0
    %v294 = vand.u32 %v89, 4294901760
    %v295 = vsub.f32 %v89, %v294
    %v296 = vand.u32 %v295, 4294901760
    %v297 = vsub.f32 %v295, %v296
    %v298 = vand.u32 %v297, 4294901760
    %299 = vmatpush1.xpose.msra.mxu0 %v298
    %300 = vmatprep.subr.mxu0 0.0
    %v301 = vand.u32 %v92, 4294901760
    %v302 = vsub.f32 %v92, %v301
    %v303 = vand.u32 %v302, 4294901760
    %v304 = vsub.f32 %v302, %v303
    %v305 = vand.u32 %v304, 4294901760
    %306 = vmatpush1.xpose.msra.mxu0 %v305
    %307 = vmatprep.subr.mxu0 0.0
    %v308 = vand.u32 %v95, 4294901760
    %v309 = vsub.f32 %v95, %v308
    %v310 = vand.u32 %v309, 4294901760
    %v311 = vsub.f32 %v309, %v310
    %v312 = vand.u32 %v311, 4294901760
    %313 = vmatpush1.xpose.msra.mxu0 %v312
    %314 = vmatprep.subr.mxu0 0.0
    %v315 = vand.u32 %v98, 4294901760
    %v316 = vsub.f32 %v98, %v315
    %v317 = vand.u32 %v316, 4294901760
    %v318 = vsub.f32 %v316, %v317
    %v319 = vand.u32 %v318, 4294901760
    %320 = vmatpush1.xpose.msra.mxu0 %v319
    %321 = vmatprep.subr.mxu0 0.0
    %v322 = vand.u32 %v101, 4294901760
    %v323 = vsub.f32 %v101, %v322
    %v324 = vand.u32 %v323, 4294901760
    %v325 = vsub.f32 %v323, %v324
    %v326 = vand.u32 %v325, 4294901760
    %327 = vmatpush1.xpose.msra.mxu0 %v326
    %328 = vmatprep.subr.mxu0 0.0
    %v329 = vand.u32 %v104, 4294901760
    %v330 = vsub.f32 %v104, %v329
    %v331 = vand.u32 %v330, 4294901760
    %v332 = vsub.f32 %v330, %v331
    %v333 = vand.u32 %v332, 4294901760
    %334 = vmatpush1.xpose.msra.mxu0 %v333
    %335 = vmatprep.subr.mxu0 0.0
    %v336 = vand.u32 %v107, 4294901760
    %v337 = vsub.f32 %v107, %v336
    %v338 = vand.u32 %v337, 4294901760
    %v339 = vsub.f32 %v337, %v338
    %v340 = vand.u32 %v339, 4294901760
    %341 = vmatpush1.xpose.msra.mxu0 %v340
    %342 = vmatprep.subr.mxu0 0.0
    %343 = vmatpush1.xpose.msra.mxu0 0.0
    %344 = vmatprep.subr.mxu0 0.0
    %345 = vmatpush1.xpose.msra.mxu0 0.0
    %346 = vmatprep.subr.mxu0 0.0
    %347 = vmatpush1.xpose.msra.mxu0 0.0
    %348 = vmatprep.subr.mxu0 0.0
    %349 = vmatpush1.xpose.msra.mxu0 0.0
    %350 = vmatprep.subr.mxu0 0.0
    %351 = vmatpush1.xpose.msra.mxu0 0.0
    %352 = vmatprep.subr.mxu0 0.0
    %353 = vmatpush1.xpose.msra.mxu0 0.0
    %354 = vmatprep.subr.mxu0 0.0
    %355 = vmatpush1.xpose.msra.mxu0 0.0
    %356 = vmatprep.subr.mxu0 0.0
    %357 = vmatpush1.xpose.msra.mxu0 0.0
    %358 = vmatprep.subr.mxu0 0.0
    %359 = vmatpush1.xpose.msra.mxu0 0.0
    %360 = vmatprep.subr.mxu0 0.0
    %361 = vmatpush1.xpose.msra.mxu0 0.0
    %362 = vmatprep.subr.mxu0 0.0
    %363 = vmatpush1.xpose.msra.mxu0 0.0
    %364 = vmatprep.subr.mxu0 0.0
    %365 = vmatpush1.xpose.msra.mxu0 0.0
    %366 = vmatprep.subr.mxu0 0.0
    %367 = vmatpush1.xpose.msra.mxu0 0.0
    %368 = vmatprep.subr.mxu0 0.0
    %369 = vmatpush1.xpose.msra.mxu0 0.0
    %370 = vmatprep.subr.mxu0 0.0
    %371 = vmatpush1.xpose.msra.mxu0 0.0
    %372 = vmatprep.subr.mxu0 0.0
    %373 = vmatpush1.xpose.msra.mxu0 0.0
    %374 = vmatprep.mubr.f32.mxu0 0.0
    %v375 = vand.u32 %v53, 4294901760
    %376 = vmatmul.mubr.f32.gmra.mrb[0].mxu0 %v375
    %v377 = vpop.f32.mrb[0].mxu0
    %v378 = vadd.f32 %v197, %v377
    %v379 = vpop.f32.mrb[0].mxu0
    %380 = vmatprep.mubr.f32.mxu0 0.0
    %v381 = vand.u32 %v55, 4294901760
    %382 = vmatmul.mubr.f32.gmra.mrb[0].mxu0 %v381
    %v383 = vpop.f32.mrb[0].mxu0
    %v384 = vadd.f32 %v207, %v383
    %v385 = vpop.f32.mrb[0].mxu0
    %386 = vmatprep.mubr.f32.mxu0 0.0
    %v387 = vand.u32 %v57, 4294901760
    %388 = vmatmul.mubr.f32.gmra.mrb[0].mxu0 %v387
    %v389 = vpop.f32.mrb[0].mxu0
    %v390 = vadd.f32 %v217, %v389
    %v391 = vpop.f32.mrb[0].mxu0
    %392 = vmatprep.mubr.f32.mxu0 0.0
    %v393 = vand.u32 %v59, 4294901760
    %394 = vmatmul.mubr.f32.gmra.mrb[0].mxu0 %v393
    %v395 = vpop.f32.mrb[0].mxu0
    %v396 = vadd.f32 %v227, %v395
    %v397 = vpop.f32.mrb[0].mxu0
    %398 = vdwg.mxu0
    %399 = vmatprep.subr.mxu0 0.0
    %v400 = vand.u32 %v62, 4294901760
    %v401 = vsub.f32 %v62, %v400
    %402 = vmatpush1.xpose.msra.mxu0 %v401
    %403 = vmatprep.subr.mxu0 0.0
    %v404 = vand.u32 %v65, 4294901760
    %v405 = vsub.f32 %v65, %v404
    %406 = vmatpush1.xpose.msra.mxu0 %v405
    %407 = vmatprep.subr.mxu0 0.0
    %v408 = vand.u32 %v68, 4294901760
    %v409 = vsub.f32 %v68, %v408
    %410 = vmatpush1.xpose.msra.mxu0 %v409
    %411 = vmatprep.subr.mxu0 0.0
    %v412 = vand.u32 %v71, 4294901760
    %v413 = vsub.f32 %v71, %v412
    %414 = vmatpush1.xpose.msra.mxu0 %v413
    %415 = vmatprep.subr.mxu0 0.0
    %v416 = vand.u32 %v74, 4294901760
    %v417 = vsub.f32 %v74, %v416
    %418 = vmatpush1.xpose.msra.mxu0 %v417
    %419 = vmatprep.subr.mxu0 0.0
    %v420 = vand.u32 %v77, 4294901760
    %v421 = vsub.f32 %v77, %v420
    %422 = vmatpush1.xpose.msra.mxu0 %v421
    %423 = vmatprep.subr.mxu0 0.0
    %v424 = vand.u32 %v80, 4294901760
    %v425 = vsub.f32 %v80, %v424
    %426 = vmatpush1.xpose.msra.mxu0 %v425
    %427 = vmatprep.subr.mxu0 0.0
    %v428 = vand.u32 %v83, 4294901760
    %v429 = vsub.f32 %v83, %v428
    %430 = vmatpush1.xpose.msra.mxu0 %v429
    %431 = vmatprep.subr.mxu0 0.0
    %v432 = vand.u32 %v86, 4294901760
    %v433 = vsub.f32 %v86, %v432
    %434 = vmatpush1.xpose.msra.mxu0 %v433
    %435 = vmatprep.subr.mxu0 0.0
    %v436 = vand.u32 %v89, 4294901760
    %v437 = vsub.f32 %v89, %v436
    %438 = vmatpush1.xpose.msra.mxu0 %v437
    %439 = vmatprep.subr.mxu0 0.0
    %v440 = vand.u32 %v92, 4294901760
    %v441 = vsub.f32 %v92, %v440
    %442 = vmatpush1.xpose.msra.mxu0 %v441
    %443 = vmatprep.subr.mxu0 0.0
    %v444 = vand.u32 %v95, 4294901760
    %v445 = vsub.f32 %v95, %v444
    %446 = vmatpush1.xpose.msra.mxu0 %v445
    %447 = vmatprep.subr.mxu0 0.0
    %v448 = vand.u32 %v98, 4294901760
    %v449 = vsub.f32 %v98, %v448
    %450 = vmatpush1.xpose.msra.mxu0 %v449
    %451 = vmatprep.subr.mxu0 0.0
    %v452 = vand.u32 %v101, 4294901760
    %v453 = vsub.f32 %v101, %v452
    %454 = vmatpush1.xpose.msra.mxu0 %v453
    %455 = vmatprep.subr.mxu0 0.0
    %v456 = vand.u32 %v104, 4294901760
    %v457 = vsub.f32 %v104, %v456
    %458 = vmatpush1.xpose.msra.mxu0 %v457
    %459 = vmatprep.subr.mxu0 0.0
    %v460 = vand.u32 %v107, 4294901760
    %v461 = vsub.f32 %v107, %v460
    %462 = vmatpush1.xpose.msra.mxu0 %v461
    %463 = vmatprep.subr.mxu0 0.0
    %464 = vmatpush1.xpose.msra.mxu0 0.0
    %465 = vmatprep.subr.mxu0 0.0
    %466 = vmatpush1.xpose.msra.mxu0 0.0
    %467 = vmatprep.subr.mxu0 0.0
    %468 = vmatpush1.xpose.msra.mxu0 0.0
    %469 = vmatprep.subr.mxu0 0.0
    %470 = vmatpush1.xpose.msra.mxu0 0.0
    %471 = vmatprep.subr.mxu0 0.0
    %472 = vmatpush1.xpose.msra.mxu0 0.0
    %473 = vmatprep.subr.mxu0 0.0
    %474 = vmatpush1.xpose.msra.mxu0 0.0
    %475 = vmatprep.subr.mxu0 0.0
    %476 = vmatpush1.xpose.msra.mxu0 0.0
    %477 = vmatprep.subr.mxu0 0.0
    %478 = vmatpush1.xpose.msra.mxu0 0.0
    %479 = vmatprep.subr.mxu0 0.0
    %480 = vmatpush1.xpose.msra.mxu0 0.0
    %481 = vmatprep.subr.mxu0 0.0
    %482 = vmatpush1.xpose.msra.mxu0 0.0
    %483 = vmatprep.subr.mxu0 0.0
    %484 = vmatpush1.xpose.msra.mxu0 0.0
    %485 = vmatprep.subr.mxu0 0.0
    %486 = vmatpush1.xpose.msra.mxu0 0.0
    %487 = vmatprep.subr.mxu0 0.0
    %488 = vmatpush1.xpose.msra.mxu0 0.0
    %489 = vmatprep.subr.mxu0 0.0
    %490 = vmatpush1.xpose.msra.mxu0 0.0
    %491 = vmatprep.subr.mxu0 0.0
    %492 = vmatpush1.xpose.msra.mxu0 0.0
    %493 = vmatprep.subr.mxu0 0.0
    %494 = vmatpush1.xpose.msra.mxu0 0.0
    %495 = vmatprep.mubr.f32.mxu0 0.0
    %v496 = vand.u32 %v53, 4294901760
    %v497 = vsub.f32 %v53, %v496
    %498 = vmatmul.mubr.f32.gmra.mrb[0].mxu0 %v497
    %v499 = vpop.f32.mrb[0].mxu0
    %v500 = vadd.f32 %v378, %v499
    %v501 = vpop.f32.mrb[0].mxu0
    %502 = vmatprep.mubr.f32.mxu0 0.0
    %v503 = vand.u32 %v55, 4294901760
    %v504 = vsub.f32 %v55, %v503
    %505 = vmatmul.mubr.f32.gmra.mrb[0].mxu0 %v504
    %v506 = vpop.f32.mrb[0].mxu0
    %v507 = vadd.f32 %v384, %v506
    %v508 = vpop.f32.mrb[0].mxu0
    %509 = vmatprep.mubr.f32.mxu0 0.0
    %v510 = vand.u32 %v57, 4294901760
    %v511 = vsub.f32 %v57, %v510
    %512 = vmatmul.mubr.f32.gmra.mrb[0].mxu0 %v511
    %v513 = vpop.f32.mrb[0].mxu0
    %v514 = vadd.f32 %v390, %v513
    %v515 = vpop.f32.mrb[0].mxu0
    %516 = vmatprep.mubr.f32.mxu0 0.0
    %v517 = vand.u32 %v59, 4294901760
    %v518 = vsub.f32 %v59, %v517
    %519 = vmatmul.mubr.f32.gmra.mrb[0].mxu0 %v518
    %v520 = vpop.f32.mrb[0].mxu0
    %v521 = vadd.f32 %v396, %v520
    %v522 = vpop.f32.mrb[0].mxu0
    %523 = vdwg.mxu0
    %524 = vmatprep.subr.mxu0 0.0
    %v525 = vand.u32 %v62, 4294901760
    %526 = vmatpush1.xpose.msra.mxu0 %v525
    %527 = vmatprep.subr.mxu0 0.0
    %v528 = vand.u32 %v65, 4294901760
    %529 = vmatpush1.xpose.msra.mxu0 %v528
    %530 = vmatprep.subr.mxu0 0.0
    %v531 = vand.u32 %v68, 4294901760
    %532 = vmatpush1.xpose.msra.mxu0 %v531
    %533 = vmatprep.subr.mxu0 0.0
    %v534 = vand.u32 %v71, 4294901760
    %535 = vmatpush1.xpose.msra.mxu0 %v534
    %536 = vmatprep.subr.mxu0 0.0
    %v537 = vand.u32 %v74, 4294901760
    %538 = vmatpush1.xpose.msra.mxu0 %v537
    %539 = vmatprep.subr.mxu0 0.0
    %v540 = vand.u32 %v77, 4294901760
    %541 = vmatpush1.xpose.msra.mxu0 %v540
    %542 = vmatprep.subr.mxu0 0.0
    %v543 = vand.u32 %v80, 4294901760
    %544 = vmatpush1.xpose.msra.mxu0 %v543
    %545 = vmatprep.subr.mxu0 0.0
    %v546 = vand.u32 %v83, 4294901760
    %547 = vmatpush1.xpose.msra.mxu0 %v546
    %548 = vmatprep.subr.mxu0 0.0
    %v549 = vand.u32 %v86, 4294901760
    %550 = vmatpush1.xpose.msra.mxu0 %v549
    %551 = vmatprep.subr.mxu0 0.0
    %v552 = vand.u32 %v89, 4294901760
    %553 = vmatpush1.xpose.msra.mxu0 %v552
    %554 = vmatprep.subr.mxu0 0.0
    %v555 = vand.u32 %v92, 4294901760
    %556 = vmatpush1.xpose.msra.mxu0 %v555
    %557 = vmatprep.subr.mxu0 0.0
    %v558 = vand.u32 %v95, 4294901760
    %559 = vmatpush1.xpose.msra.mxu0 %v558
    %560 = vmatprep.subr.mxu0 0.0
    %v561 = vand.u32 %v98, 4294901760
    %562 = vmatpush1.xpose.msra.mxu0 %v561
    %563 = vmatprep.subr.mxu0 0.0
    %v564 = vand.u32 %v101, 4294901760
    %565 = vmatpush1.xpose.msra.mxu0 %v564
    %566 = vmatprep.subr.mxu0 0.0
    %v567 = vand.u32 %v104, 4294901760
    %568 = vmatpush1.xpose.msra.mxu0 %v567
    %569 = vmatprep.subr.mxu0 0.0
    %v570 = vand.u32 %v107, 4294901760
    %571 = vmatpush1.xpose.msra.mxu0 %v570
    %572 = vmatprep.subr.mxu0 0.0
    %573 = vmatpush1.xpose.msra.mxu0 0.0
    %574 = vmatprep.subr.mxu0 0.0
    %575 = vmatpush1.xpose.msra.mxu0 0.0
    %576 = vmatprep.subr.mxu0 0.0
    %577 = vmatpush1.xpose.msra.mxu0 0.0
    %578 = vmatprep.subr.mxu0 0.0
    %579 = vmatpush1.xpose.msra.mxu0 0.0
    %580 = vmatprep.subr.mxu0 0.0
    %581 = vmatpush1.xpose.msra.mxu0 0.0
    %582 = vmatprep.subr.mxu0 0.0
    %583 = vmatpush1.xpose.msra.mxu0 0.0
    %584 = vmatprep.subr.mxu0 0.0
    %585 = vmatpush1.xpose.msra.mxu0 0.0
    %586 = vmatprep.subr.mxu0 0.0
    %587 = vmatpush1.xpose.msra.mxu0 0.0
    %588 = vmatprep.subr.mxu0 0.0
    %589 = vmatpush1.xpose.msra.mxu0 0.0
    %590 = vmatprep.subr.mxu0 0.0
    %591 = vmatpush1.xpose.msra.mxu0 0.0
    %592 = vmatprep.subr.mxu0 0.0
    %593 = vmatpush1.xpose.msra.mxu0 0.0
    %594 = vmatprep.subr.mxu0 0.0
    %595 = vmatpush1.xpose.msra.mxu0 0.0
    %596 = vmatprep.subr.mxu0 0.0
    %597 = vmatpush1.xpose.msra.mxu0 0.0
    %598 = vmatprep.subr.mxu0 0.0
    %599 = vmatpush1.xpose.msra.mxu0 0.0
    %600 = vmatprep.subr.mxu0 0.0
    %601 = vmatpush1.xpose.msra.mxu0 0.0
    %602 = vmatprep.subr.mxu0 0.0
    %603 = vmatpush1.xpose.msra.mxu0 0.0
    %604 = vmatprep.mubr.f32.mxu0 0.0
    %v605 = vand.u32 %v53, 4294901760
    %v606 = vsub.f32 %v53, %v605
    %v607 = vand.u32 %v606, 4294901760
    %608 = vmatmul.mubr.f32.gmra.mrb[0].mxu0 %v607
    %v609 = vpop.f32.mrb[0].mxu0
    %v610 = vadd.f32 %v500, %v609
    %v611 = vpop.f32.mrb[0].mxu0
    %612 = vmatprep.mubr.f32.mxu0 0.0
    %v613 = vand.u32 %v55, 4294901760
    %v614 = vsub.f32 %v55, %v613
    %v615 = vand.u32 %v614, 4294901760
    %616 = vmatmul.mubr.f32.gmra.mrb[0].mxu0 %v615
    %v617 = vpop.f32.mrb[0].mxu0
    %v618 = vadd.f32 %v507, %v617
    %v619 = vpop.f32.mrb[0].mxu0
    %620 = vmatprep.mubr.f32.mxu0 0.0
    %v621 = vand.u32 %v57, 4294901760
    %v622 = vsub.f32 %v57, %v621
    %v623 = vand.u32 %v622, 4294901760
    %624 = vmatmul.mubr.f32.gmra.mrb[0].mxu0 %v623
    %v625 = vpop.f32.mrb[0].mxu0
    %v626 = vadd.f32 %v514, %v625
    %v627 = vpop.f32.mrb[0].mxu0
    %628 = vmatprep.mubr.f32.mxu0 0.0
    %v629 = vand.u32 %v59, 4294901760
    %v630 = vsub.f32 %v59, %v629
    %v631 = vand.u32 %v630, 4294901760
    %632 = vmatmul.mubr.f32.gmra.mrb[0].mxu0 %v631
    %v633 = vpop.f32.mrb[0].mxu0
    %v634 = vadd.f32 %v521, %v633
    %v635 = vpop.f32.mrb[0].mxu0
    %636 = vdwg.mxu0
    %637 = vmatprep.subr.mxu0 0.0
    %v638 = vand.u32 %v62, 4294901760
    %v639 = vsub.f32 %v62, %v638
    %v640 = vand.u32 %v639, 4294901760
    %641 = vmatpush1.xpose.msra.mxu0 %v640
    %642 = vmatprep.subr.mxu0 0.0
    %v643 = vand.u32 %v65, 4294901760
    %v644 = vsub.f32 %v65, %v643
    %v645 = vand.u32 %v644, 4294901760
    %646 = vmatpush1.xpose.msra.mxu0 %v645
    %647 = vmatprep.subr.mxu0 0.0
    %v648 = vand.u32 %v68, 4294901760
    %v649 = vsub.f32 %v68, %v648
    %v650 = vand.u32 %v649, 4294901760
    %651 = vmatpush1.xpose.msra.mxu0 %v650
    %652 = vmatprep.subr.mxu0 0.0
    %v653 = vand.u32 %v71, 4294901760
    %v654 = vsub.f32 %v71, %v653
    %v655 = vand.u32 %v654, 4294901760
    %656 = vmatpush1.xpose.msra.mxu0 %v655
    %657 = vmatprep.subr.mxu0 0.0
    %v658 = vand.u32 %v74, 4294901760
    %v659 = vsub.f32 %v74, %v658
    %v660 = vand.u32 %v659, 4294901760
    %661 = vmatpush1.xpose.msra.mxu0 %v660
    %662 = vmatprep.subr.mxu0 0.0
    %v663 = vand.u32 %v77, 4294901760
    %v664 = vsub.f32 %v77, %v663
    %v665 = vand.u32 %v664, 4294901760
    %666 = vmatpush1.xpose.msra.mxu0 %v665
    %667 = vmatprep.subr.mxu0 0.0
    %v668 = vand.u32 %v80, 4294901760
    %v669 = vsub.f32 %v80, %v668
    %v670 = vand.u32 %v669, 4294901760
    %671 = vmatpush1.xpose.msra.mxu0 %v670
    %672 = vmatprep.subr.mxu0 0.0
    %v673 = vand.u32 %v83, 4294901760
    %v674 = vsub.f32 %v83, %v673
    %v675 = vand.u32 %v674, 4294901760
    %676 = vmatpush1.xpose.msra.mxu0 %v675
    %677 = vmatprep.subr.mxu0 0.0
    %v678 = vand.u32 %v86, 4294901760
    %v679 = vsub.f32 %v86, %v678
    %v680 = vand.u32 %v679, 4294901760
    %681 = vmatpush1.xpose.msra.mxu0 %v680
    %682 = vmatprep.subr.mxu0 0.0
    %v683 = vand.u32 %v89, 4294901760
    %v684 = vsub.f32 %v89, %v683
    %v685 = vand.u32 %v684, 4294901760
    %686 = vmatpush1.xpose.msra.mxu0 %v685
    %687 = vmatprep.subr.mxu0 0.0
    %v688 = vand.u32 %v92, 4294901760
    %v689 = vsub.f32 %v92, %v688
    %v690 = vand.u32 %v689, 4294901760
    %691 = vmatpush1.xpose.msra.mxu0 %v690
    %692 = vmatprep.subr.mxu0 0.0
    %v693 = vand.u32 %v95, 4294901760
    %v694 = vsub.f32 %v95, %v693
    %v695 = vand.u32 %v694, 4294901760
    %696 = vmatpush1.xpose.msra.mxu0 %v695
    %697 = vmatprep.subr.mxu0 0.0
    %v698 = vand.u32 %v98, 4294901760
    %v699 = vsub.f32 %v98, %v698
    %v700 = vand.u32 %v699, 4294901760
    %701 = vmatpush1.xpose.msra.mxu0 %v700
    %702 = vmatprep.subr.mxu0 0.0
    %v703 = vand.u32 %v101, 4294901760
    %v704 = vsub.f32 %v101, %v703
    %v705 = vand.u32 %v704, 4294901760
    %706 = vmatpush1.xpose.msra.mxu0 %v705
    %707 = vmatprep.subr.mxu0 0.0
    %v708 = vand.u32 %v104, 4294901760
    %v709 = vsub.f32 %v104, %v708
    %v710 = vand.u32 %v709, 4294901760
    %711 = vmatpush1.xpose.msra.mxu0 %v710
    %712 = vmatprep.subr.mxu0 0.0
    %v713 = vand.u32 %v107, 4294901760
    %v714 = vsub.f32 %v107, %v713
    %v715 = vand.u32 %v714, 4294901760
    %716 = vmatpush1.xpose.msra.mxu0 %v715
    %717 = vmatprep.subr.mxu0 0.0
    %718 = vmatpush1.xpose.msra.mxu0 0.0
    %719 = vmatprep.subr.mxu0 0.0
    %720 = vmatpush1.xpose.msra.mxu0 0.0
    %721 = vmatprep.subr.mxu0 0.0
    %722 = vmatpush1.xpose.msra.mxu0 0.0
    %723 = vmatprep.subr.mxu0 0.0
    %724 = vmatpush1.xpose.msra.mxu0 0.0
    %725 = vmatprep.subr.mxu0 0.0
    %726 = vmatpush1.xpose.msra.mxu0 0.0
    %727 = vmatprep.subr.mxu0 0.0
    %728 = vmatpush1.xpose.msra.mxu0 0.0
    %729 = vmatprep.subr.mxu0 0.0
    %730 = vmatpush1.xpose.msra.mxu0 0.0
    %731 = vmatprep.subr.mxu0 0.0
    %732 = vmatpush1.xpose.msra.mxu0 0.0
    %733 = vmatprep.subr.mxu0 0.0
    %734 = vmatpush1.xpose.msra.mxu0 0.0
    %735 = vmatprep.subr.mxu0 0.0
    %736 = vmatpush1.xpose.msra.mxu0 0.0
    %737 = vmatprep.subr.mxu0 0.0
    %738 = vmatpush1.xpose.msra.mxu0 0.0
    %739 = vmatprep.subr.mxu0 0.0
    %740 = vmatpush1.xpose.msra.mxu0 0.0
    %741 = vmatprep.subr.mxu0 0.0
    %742 = vmatpush1.xpose.msra.mxu0 0.0
    %743 = vmatprep.subr.mxu0 0.0
    %744 = vmatpush1.xpose.msra.mxu0 0.0
    %745 = vmatprep.subr.mxu0 0.0
    %746 = vmatpush1.xpose.msra.mxu0 0.0
    %747 = vmatprep.subr.mxu0 0.0
    %748 = vmatpush1.xpose.msra.mxu0 0.0
    %749 = vmatprep.mubr.f32.mxu0 0.0
    %v750 = vand.u32 %v53, 4294901760
    %751 = vmatmul.mubr.f32.gmra.mrb[0].mxu0 %v750
    %v752 = vpop.f32.mrb[0].mxu0
    %v753 = vadd.f32 %v610, %v752
    %v754 = vpop.f32.mrb[0].mxu0
    %755 = vmatprep.mubr.f32.mxu0 0.0
    %v756 = vand.u32 %v55, 4294901760
    %757 = vmatmul.mubr.f32.gmra.mrb[0].mxu0 %v756
    %v758 = vpop.f32.mrb[0].mxu0
    %v759 = vadd.f32 %v618, %v758
    %v760 = vpop.f32.mrb[0].mxu0
    %761 = vmatprep.mubr.f32.mxu0 0.0
    %v762 = vand.u32 %v57, 4294901760
    %763 = vmatmul.mubr.f32.gmra.mrb[0].mxu0 %v762
    %v764 = vpop.f32.mrb[0].mxu0
    %v765 = vadd.f32 %v626, %v764
    %v766 = vpop.f32.mrb[0].mxu0
    %767 = vmatprep.mubr.f32.mxu0 0.0
    %v768 = vand.u32 %v59, 4294901760
    %769 = vmatmul.mubr.f32.gmra.mrb[0].mxu0 %v768
    %v770 = vpop.f32.mrb[0].mxu0
    %v771 = vadd.f32 %v634, %v770
    %v772 = vpop.f32.mrb[0].mxu0
    %773 = vdwg.mxu0
    %774 = vmatprep.subr.mxu0 0.0
    %v775 = vand.u32 %v62, 4294901760
    %776 = vmatpush1.xpose.msra.mxu0 %v775
    %777 = vmatprep.subr.mxu0 0.0
    %v778 = vand.u32 %v65, 4294901760
    %779 = vmatpush1.xpose.msra.mxu0 %v778
    %780 = vmatprep.subr.mxu0 0.0
    %v781 = vand.u32 %v68, 4294901760
    %782 = vmatpush1.xpose.msra.mxu0 %v781
    %783 = vmatprep.subr.mxu0 0.0
    %v784 = vand.u32 %v71, 4294901760
    %785 = vmatpush1.xpose.msra.mxu0 %v784
    %786 = vmatprep.subr.mxu0 0.0
    %v787 = vand.u32 %v74, 4294901760
    %788 = vmatpush1.xpose.msra.mxu0 %v787
    %789 = vmatprep.subr.mxu0 0.0
    %v790 = vand.u32 %v77, 4294901760
    %791 = vmatpush1.xpose.msra.mxu0 %v790
    %792 = vmatprep.subr.mxu0 0.0
    %v793 = vand.u32 %v80, 4294901760
    %794 = vmatpush1.xpose.msra.mxu0 %v793
    %795 = vmatprep.subr.mxu0 0.0
    %v796 = vand.u32 %v83, 4294901760
    %797 = vmatpush1.xpose.msra.mxu0 %v796
    %798 = vmatprep.subr.mxu0 0.0
    %v799 = vand.u32 %v86, 4294901760
    %800 = vmatpush1.xpose.msra.mxu0 %v799
    %801 = vmatprep.subr.mxu0 0.0
    %v802 = vand.u32 %v89, 4294901760
    %803 = vmatpush1.xpose.msra.mxu0 %v802
    %804 = vmatprep.subr.mxu0 0.0
    %v805 = vand.u32 %v92, 4294901760
    %806 = vmatpush1.xpose.msra.mxu0 %v805
    %807 = vmatprep.subr.mxu0 0.0
    %v808 = vand.u32 %v95, 4294901760
    %809 = vmatpush1.xpose.msra.mxu0 %v808
    %810 = vmatprep.subr.mxu0 0.0
    %v811 = vand.u32 %v98, 4294901760
    %812 = vmatpush1.xpose.msra.mxu0 %v811
    %813 = vmatprep.subr.mxu0 0.0
    %v814 = vand.u32 %v101, 4294901760
    %815 = vmatpush1.xpose.msra.mxu0 %v814
    %816 = vmatprep.subr.mxu0 0.0
    %v817 = vand.u32 %v104, 4294901760
    %818 = vmatpush1.xpose.msra.mxu0 %v817
    %819 = vmatprep.subr.mxu0 0.0
    %v820 = vand.u32 %v107, 4294901760
    %821 = vmatpush1.xpose.msra.mxu0 %v820
    %822 = vmatprep.subr.mxu0 0.0
    %823 = vmatpush1.xpose.msra.mxu0 0.0
    %824 = vmatprep.subr.mxu0 0.0
    %825 = vmatpush1.xpose.msra.mxu0 0.0
    %826 = vmatprep.subr.mxu0 0.0
    %827 = vmatpush1.xpose.msra.mxu0 0.0
    %828 = vmatprep.subr.mxu0 0.0
    %829 = vmatpush1.xpose.msra.mxu0 0.0
    %830 = vmatprep.subr.mxu0 0.0
    %831 = vmatpush1.xpose.msra.mxu0 0.0
    %832 = vmatprep.subr.mxu0 0.0
    %833 = vmatpush1.xpose.msra.mxu0 0.0
    %834 = vmatprep.subr.mxu0 0.0
    %835 = vmatpush1.xpose.msra.mxu0 0.0
    %836 = vmatprep.subr.mxu0 0.0
    %837 = vmatpush1.xpose.msra.mxu0 0.0
    %838 = vmatprep.subr.mxu0 0.0
    %839 = vmatpush1.xpose.msra.mxu0 0.0
    %840 = vmatprep.subr.mxu0 0.0
    %841 = vmatpush1.xpose.msra.mxu0 0.0
    %842 = vmatprep.subr.mxu0 0.0
    %843 = vmatpush1.xpose.msra.mxu0 0.0
    %844 = vmatprep.subr.mxu0 0.0
    %845 = vmatpush1.xpose.msra.mxu0 0.0
    %846 = vmatprep.subr.mxu0 0.0
    %847 = vmatpush1.xpose.msra.mxu0 0.0
    %848 = vmatprep.subr.mxu0 0.0
    %849 = vmatpush1.xpose.msra.mxu0 0.0
    %850 = vmatprep.subr.mxu0 0.0
    %851 = vmatpush1.xpose.msra.mxu0 0.0
    %852 = vmatprep.subr.mxu0 0.0
    %853 = vmatpush1.xpose.msra.mxu0 0.0
    %854 = vmatprep.mubr.f32.mxu0 0.0
    %v855 = vand.u32 %v53, 4294901760
    %856 = vmatmul.mubr.f32.gmra.mrb[0].mxu0 %v855
    %v857 = vpop.f32.mrb[0].mxu0
    %v858 = vadd.f32 %v753, %v857
    %v859 = vpop.f32.mrb[0].mxu0
    %860 = vmatprep.mubr.f32.mxu0 0.0
    %v861 = vand.u32 %v55, 4294901760
    %862 = vmatmul.mubr.f32.gmra.mrb[0].mxu0 %v861
    %v863 = vpop.f32.mrb[0].mxu0
    %v864 = vadd.f32 %v759, %v863
    %v865 = vpop.f32.mrb[0].mxu0
    %866 = vmatprep.mubr.f32.mxu0 0.0
    %v867 = vand.u32 %v57, 4294901760
    %868 = vmatmul.mubr.f32.gmra.mrb[0].mxu0 %v867
    %v869 = vpop.f32.mrb[0].mxu0
    %v870 = vadd.f32 %v765, %v869
    %v871 = vpop.f32.mrb[0].mxu0
    %872 = vmatprep.mubr.f32.mxu0 0.0
    %v873 = vand.u32 %v59, 4294901760
    %874 = vmatmul.mubr.f32.gmra.mrb[0].mxu0 %v873
    %v875 = vpop.f32.mrb[0].mxu0
    %v876 = vadd.f32 %v771, %v875
    %v877 = vpop.f32.mrb[0].mxu0
    %878 = vdwg.mxu0
    %v879 = vand.u32 2147483647, %v858
    %vm880 = vcmp.le.f32.partialorder %v879, 0.7853982
    %vm881 = vcmp.lt.s32.totalorder %v858, 0
    %v882 = vand.u32 %v858, 2139095040
    %v883 = vshrl.u32 %v882, 23
    %v884 = vsub.s32 %v883, 127
    %v885 = vand.u32 2147483647, %v858
    %v886 = vand.u32 %v885, 8388607
    %v887 = vor.u32 %v886, 8388608
    %v888 = vsub.s32 0, %v887
    %v889 = vadd.s32 %v884, 1
    %vm890 = vcmp.gt.s32.totalorder %v889, 0
    %v891 = vsel %vm890, %v889, 0
    %v892 = vshrl.u32 %v891, 5
    %v893 = vand.u32 %v891, 31
    %v894 = vsub.s32 32, %v893
    %v895 = vshrl.u32 683565275, %v894
    %v896 = vshll.u32 683565275, %v893
    %v897 = vshrl.u32 2475754826, %v894
    %v898 = vor.u32 %v896, %v897
    %v899 = vshll.u32 2475754826, %v893
    %v900 = vshrl.u32 2131351028, %v894
    %v901 = vor.u32 %v899, %v900
    %v902 = vshll.u32 2131351028, %v893
    %v903 = vshrl.u32 2102212464, %v894
    %v904 = vor.u32 %v902, %v903
    %v905 = vshll.u32 2102212464, %v893
    %v906 = vshrl.u32 920167782, %v894
    %v907 = vor.u32 %v905, %v906
    %v908 = vshll.u32 920167782, %v893
    %v909 = vshrl.u32 1326507024, %v894
    %v910 = vor.u32 %v908, %v909
    %vm911 = vcmp.lt.s32.totalorder %v892, 1
    %vm912 = vcmp.lt.s32.totalorder %v892, 2
    %vm913 = vcmp.lt.s32.totalorder %v892, 3
    %vm914 = vcmp.lt.s32.totalorder %v892, 4
    %v915 = vsel %vm911, %v895, %v898
    %v916 = vsel %vm914, %v904, 2102212464
    %v917 = vsel %vm913, %v901, %v916
    %v918 = vsel %vm912, %v915, %v917
    %v919 = vsel %vm911, %v898, %v901
    %v920 = vsel %vm914, %v907, 920167782
    %v921 = vsel %vm913, %v904, %v920
    %v922 = vsel %vm912, %v919, %v921
    %v923 = vsel %vm911, %v901, %v904
    %v924 = vsel %vm914, %v910, 1326507024
    %v925 = vsel %vm913, %v907, %v924
    %v926 = vsel %vm912, %v923, %v925
    %v927 = vshll.u32 %v887, 8
    %v928 = vmul.u32.u64.compose %v927, %v926
    %v929 = vextract.low.u32 %v928
    %v930 = vextract.high.u32 %v928
    %v931 = vmul.u32.u64.compose %v927, %v922
    %v932 = vextract.low.u32 %v931
    %v933 = vextract.high.u32 %v931
    %v934 = vmul.u32 %v927, %v918
    %v935 = vadd.s32 %v930, %v932
    %vm936 = vc.u32 %v930, %v932
    %v937 = vadd.s32 %v933, 1
    %v938 = vsel %vm936, %v937, %v933
    %v939 = vadd.s32 %v934, %v938
    %v940 = vadd.s32 %v939, 536870912
    %v941 = vshrl.u32 %v940, 30
    %v942 = vshll.u32 %v941, 30
    %v943 = vsub.s32 %v939, %v942
    %vm944 = vcmp.lt.s32.totalorder %v943, 0
    %v945 = vsub.s32 0, %v943
    %v946 = vsel %vm944, %v945, %v943
    %v947 = vclz %v946
    %v948 = vsub.s32 %v947, 2
    %vm949 = vcmp.gt.s32.totalorder 0, %v948
    %v950 = vsel %vm949, 0, %v948
    %v951 = vsub.s32 32, %v950
    %v952 = vshll.u32 %v943, %v950
    %v953 = vshrl.u32 %v935, %v951
    %v954 = vor.u32 %v952, %v953
    %v955 = vsub.s32 4294967266, %v950
    %v956 = vadd.s32 %v955, 127
    %v957 = vshll.u32 %v956, 23
    %v958 = vor.u32 4788187, %v957
    %v959 = vand.u32 2147483647, %v958
    %v961 = vcvt.s32.f32 %v954
    %v962 = vmul.f32 %v961, %v959
    %v963 = vxor.u32 %v962, 2147483648
    %v964 = vsel %vm881, %v963, %v962
    %v965 = vsub.s32 4, %v941
    %v966 = vsel %vm881, %v965, %v941
    %v967 = vsel %vm880, %v858, %v964
    %v968 = vsel %vm880, 0, %v966
    %v969 = vcosq.f32.pop %v967
    %v970 = vsinq.f32.pop %v967
    %vm971 = vweird.f32 %v858
    %v972 = vadd.s32 %v968, 3
    %v973 = vand.u32 %v972, 3
    %vm974 = vcmp.lt.s32.totalorder %v973, 2
    %vm975 = vcmp.eq.s32.totalorder %v973, 0
    %v976 = vxor.u32 %v970, 2147483648
    %v977 = vsel %vm975, %v969, %v976
    %vm978 = vcmp.eq.s32.totalorder %v973, 2
    %v979 = vxor.u32 %v969, 2147483648
    %v980 = vsel %vm978, %v979, %v970
    %v981 = vsel %vm974, %v977, %v980
    %v982 = vsel %vm971, nan, %v981
    %v983 = vand.u32 2147483647, %v864
    %vm984 = vcmp.le.f32.partialorder %v983, 0.7853982
    %vm985 = vcmp.lt.s32.totalorder %v864, 0
    %v986 = vand.u32 %v864, 2139095040
    %v987 = vshrl.u32 %v986, 23
    %v988 = vsub.s32 %v987, 127
    %v989 = vand.u32 2147483647, %v864
    %v990 = vand.u32 %v989, 8388607
    %v991 = vor.u32 %v990, 8388608
    %v992 = vsub.s32 0, %v991
    %v993 = vadd.s32 %v988, 1
    %vm994 = vcmp.gt.s32.totalorder %v993, 0
    %v995 = vsel %vm994, %v993, 0
    %v996 = vshrl.u32 %v995, 5
    %v997 = vand.u32 %v995, 31
    %v998 = vsub.s32 32, %v997
    %v999 = vshrl.u32 683565275, %v998
    %v1000 = vshll.u32 683565275, %v997
    %v1001 = vshrl.u32 2475754826, %v998
    %v1002 = vor.u32 %v1000, %v1001
    %v1003 = vshll.u32 2475754826, %v997
    %v1004 = vshrl.u32 2131351028, %v998
    %v1005 = vor.u32 %v1003, %v1004
    %v1006 = vshll.u32 2131351028, %v997
    %v1007 = vshrl.u32 2102212464, %v998
    %v1008 = vor.u32 %v1006, %v1007
    %v1009 = vshll.u32 2102212464, %v997
    %v1010 = vshrl.u32 920167782, %v998
    %v1011 = vor.u32 %v1009, %v1010
    %v1012 = vshll.u32 920167782, %v997
    %v1013 = vshrl.u32 1326507024, %v998
    %v1014 = vor.u32 %v1012, %v1013
    %vm1015 = vcmp.lt.s32.totalorder %v996, 1
    %vm1016 = vcmp.lt.s32.totalorder %v996, 2
    %vm1017 = vcmp.lt.s32.totalorder %v996, 3
    %vm1018 = vcmp.lt.s32.totalorder %v996, 4
    %v1019 = vsel %vm1015, %v999, %v1002
    %v1020 = vsel %vm1018, %v1008, 2102212464
    %v1021 = vsel %vm1017, %v1005, %v1020
    %v1022 = vsel %vm1016, %v1019, %v1021
    %v1023 = vsel %vm1015, %v1002, %v1005
    %v1024 = vsel %vm1018, %v1011, 920167782
    %v1025 = vsel %vm1017, %v1008, %v1024
    %v1026 = vsel %vm1016, %v1023, %v1025
    %v1027 = vsel %vm1015, %v1005, %v1008
    %v1028 = vsel %vm1018, %v1014, 1326507024
    %v1029 = vsel %vm1017, %v1011, %v1028
    %v1030 = vsel %vm1016, %v1027, %v1029
    %v1031 = vshll.u32 %v991, 8
    %v1032 = vmul.u32.u64.compose %v1031, %v1030
    %v1033 = vextract.low.u32 %v1032
    %v1034 = vextract.high.u32 %v1032
    %v1035 = vmul.u32.u64.compose %v1031, %v1026
    %v1036 = vextract.low.u32 %v1035
    %v1037 = vextract.high.u32 %v1035
    %v1038 = vmul.u32 %v1031, %v1022
    %v1039 = vadd.s32 %v1034, %v1036
    %vm1040 = vc.u32 %v1034, %v1036
    %v1041 = vadd.s32 %v1037, 1
    %v1042 = vsel %vm1040, %v1041, %v1037
    %v1043 = vadd.s32 %v1038, %v1042
    %v1044 = vadd.s32 %v1043, 536870912
    %v1045 = vshrl.u32 %v1044, 30
    %v1046 = vshll.u32 %v1045, 30
    %v1047 = vsub.s32 %v1043, %v1046
    %vm1048 = vcmp.lt.s32.totalorder %v1047, 0
    %v1049 = vsub.s32 0, %v1047
    %v1050 = vsel %vm1048, %v1049, %v1047
    %v1051 = vclz %v1050
    %v1052 = vsub.s32 %v1051, 2
    %vm1053 = vcmp.gt.s32.totalorder 0, %v1052
    %v1054 = vsel %vm1053, 0, %v1052
    %v1055 = vsub.s32 32, %v1054
    %v1056 = vshll.u32 %v1047, %v1054
    %v1057 = vshrl.u32 %v1039, %v1055
    %v1058 = vor.u32 %v1056, %v1057
    %v1059 = vsub.s32 4294967266, %v1054
    %v1060 = vadd.s32 %v1059, 127
    %v1061 = vshll.u32 %v1060, 23
    %v1062 = vor.u32 4788187, %v1061
    %v1063 = vand.u32 2147483647, %v1062
    %v1065 = vcvt.s32.f32 %v1058
    %v1066 = vmul.f32 %v1065, %v1063
    %v1067 = vxor.u32 %v1066, 2147483648
    %v1068 = vsel %vm985, %v1067, %v1066
    %v1069 = vsub.s32 4, %v1045
    %v1070 = vsel %vm985, %v1069, %v1045
    %v1071 = vsel %vm984, %v864, %v1068
    %v1072 = vsel %vm984, 0, %v1070
    %v1073 = vcosq.f32.pop %v1071
    %v1074 = vsinq.f32.pop %v1071
    %vm1075 = vweird.f32 %v864
    %v1076 = vadd.s32 %v1072, 3
    %v1077 = vand.u32 %v1076, 3
    %vm1078 = vcmp.lt.s32.totalorder %v1077, 2
    %vm1079 = vcmp.eq.s32.totalorder %v1077, 0
    %v1080 = vxor.u32 %v1074, 2147483648
    %v1081 = vsel %vm1079, %v1073, %v1080
    %vm1082 = vcmp.eq.s32.totalorder %v1077, 2
    %v1083 = vxor.u32 %v1073, 2147483648
    %v1084 = vsel %vm1082, %v1083, %v1074
    %v1085 = vsel %vm1078, %v1081, %v1084
    %v1086 = vsel %vm1075, nan, %v1085
    %v1087 = vand.u32 2147483647, %v870
    %vm1088 = vcmp.le.f32.partialorder %v1087, 0.7853982
    %vm1089 = vcmp.lt.s32.totalorder %v870, 0
    %v1090 = vand.u32 %v870, 2139095040
    %v1091 = vshrl.u32 %v1090, 23
    %v1092 = vsub.s32 %v1091, 127
    %v1093 = vand.u32 2147483647, %v870
    %v1094 = vand.u32 %v1093, 8388607
    %v1095 = vor.u32 %v1094, 8388608
    %v1096 = vsub.s32 0, %v1095
    %v1097 = vadd.s32 %v1092, 1
    %vm1098 = vcmp.gt.s32.totalorder %v1097, 0
    %v1099 = vsel %vm1098, %v1097, 0
    %v1100 = vshrl.u32 %v1099, 5
    %v1101 = vand.u32 %v1099, 31
    %v1102 = vsub.s32 32, %v1101
    %v1103 = vshrl.u32 683565275, %v1102
    %v1104 = vshll.u32 683565275, %v1101
    %v1105 = vshrl.u32 2475754826, %v1102
    %v1106 = vor.u32 %v1104, %v1105
    %v1107 = vshll.u32 2475754826, %v1101
    %v1108 = vshrl.u32 2131351028, %v1102
    %v1109 = vor.u32 %v1107, %v1108
    %v1110 = vshll.u32 2131351028, %v1101
    %v1111 = vshrl.u32 2102212464, %v1102
    %v1112 = vor.u32 %v1110, %v1111
    %v1113 = vshll.u32 2102212464, %v1101
    %v1114 = vshrl.u32 920167782, %v1102
    %v1115 = vor.u32 %v1113, %v1114
    %v1116 = vshll.u32 920167782, %v1101
    %v1117 = vshrl.u32 1326507024, %v1102
    %v1118 = vor.u32 %v1116, %v1117
    %vm1119 = vcmp.lt.s32.totalorder %v1100, 1
    %vm1120 = vcmp.lt.s32.totalorder %v1100, 2
    %vm1121 = vcmp.lt.s32.totalorder %v1100, 3
    %vm1122 = vcmp.lt.s32.totalorder %v1100, 4
    %v1123 = vsel %vm1119, %v1103, %v1106
    %v1124 = vsel %vm1122, %v1112, 2102212464
    %v1125 = vsel %vm1121, %v1109, %v1124
    %v1126 = vsel %vm1120, %v1123, %v1125
    %v1127 = vsel %vm1119, %v1106, %v1109
    %v1128 = vsel %vm1122, %v1115, 920167782
    %v1129 = vsel %vm1121, %v1112, %v1128
    %v1130 = vsel %vm1120, %v1127, %v1129
    %v1131 = vsel %vm1119, %v1109, %v1112
    %v1132 = vsel %vm1122, %v1118, 1326507024
    %v1133 = vsel %vm1121, %v1115, %v1132
    %v1134 = vsel %vm1120, %v1131, %v1133
    %v1135 = vshll.u32 %v1095, 8
    %v1136 = vmul.u32.u64.compose %v1135, %v1134
    %v1137 = vextract.low.u32 %v1136
    %v1138 = vextract.high.u32 %v1136
    %v1139 = vmul.u32.u64.compose %v1135, %v1130
    %v1140 = vextract.low.u32 %v1139
    %v1141 = vextract.high.u32 %v1139
    %v1142 = vmul.u32 %v1135, %v1126
    %v1143 = vadd.s32 %v1138, %v1140
    %vm1144 = vc.u32 %v1138, %v1140
    %v1145 = vadd.s32 %v1141, 1
    %v1146 = vsel %vm1144, %v1145, %v1141
    %v1147 = vadd.s32 %v1142, %v1146
    %v1148 = vadd.s32 %v1147, 536870912
    %v1149 = vshrl.u32 %v1148, 30
    %v1150 = vshll.u32 %v1149, 30
    %v1151 = vsub.s32 %v1147, %v1150
    %vm1152 = vcmp.lt.s32.totalorder %v1151, 0
    %v1153 = vsub.s32 0, %v1151
    %v1154 = vsel %vm1152, %v1153, %v1151
    %v1155 = vclz %v1154
    %v1156 = vsub.s32 %v1155, 2
    %vm1157 = vcmp.gt.s32.totalorder 0, %v1156
    %v1158 = vsel %vm1157, 0, %v1156
    %v1159 = vsub.s32 32, %v1158
    %v1160 = vshll.u32 %v1151, %v1158
    %v1161 = vshrl.u32 %v1143, %v1159
    %v1162 = vor.u32 %v1160, %v1161
    %v1163 = vsub.s32 4294967266, %v1158
    %v1164 = vadd.s32 %v1163, 127
    %v1165 = vshll.u32 %v1164, 23
    %v1166 = vor.u32 4788187, %v1165
    %v1167 = vand.u32 2147483647, %v1166
    %v1169 = vcvt.s32.f32 %v1162
    %v1170 = vmul.f32 %v1169, %v1167
    %v1171 = vxor.u32 %v1170, 2147483648
    %v1172 = vsel %vm1089, %v1171, %v1170
    %v1173 = vsub.s32 4, %v1149
    %v1174 = vsel %vm1089, %v1173, %v1149
    %v1175 = vsel %vm1088, %v870, %v1172
    %v1176 = vsel %vm1088, 0, %v1174
    %v1177 = vcosq.f32.pop %v1175
    %v1178 = vsinq.f32.pop %v1175
    %vm1179 = vweird.f32 %v870
    %v1180 = vadd.s32 %v1176, 3
    %v1181 = vand.u32 %v1180, 3
    %vm1182 = vcmp.lt.s32.totalorder %v1181, 2
    %vm1183 = vcmp.eq.s32.totalorder %v1181, 0
    %v1184 = vxor.u32 %v1178, 2147483648
    %v1185 = vsel %vm1183, %v1177, %v1184
    %vm1186 = vcmp.eq.s32.totalorder %v1181, 2
    %v1187 = vxor.u32 %v1177, 2147483648
    %v1188 = vsel %vm1186, %v1187, %v1178
    %v1189 = vsel %vm1182, %v1185, %v1188
    %v1190 = vsel %vm1179, nan, %v1189
    %v1191 = vand.u32 2147483647, %v876
    %vm1192 = vcmp.le.f32.partialorder %v1191, 0.7853982
    %vm1193 = vcmp.lt.s32.totalorder %v876, 0
    %v1194 = vand.u32 %v876, 2139095040
    %v1195 = vshrl.u32 %v1194, 23
    %v1196 = vsub.s32 %v1195, 127
    %v1197 = vand.u32 2147483647, %v876
    %v1198 = vand.u32 %v1197, 8388607
    %v1199 = vor.u32 %v1198, 8388608
    %v1200 = vsub.s32 0, %v1199
    %v1201 = vadd.s32 %v1196, 1
    %vm1202 = vcmp.gt.s32.totalorder %v1201, 0
    %v1203 = vsel %vm1202, %v1201, 0
    %v1204 = vshrl.u32 %v1203, 5
    %v1205 = vand.u32 %v1203, 31
    %v1206 = vsub.s32 32, %v1205
    %v1207 = vshrl.u32 683565275, %v1206
    %v1208 = vshll.u32 683565275, %v1205
    %v1209 = vshrl.u32 2475754826, %v1206
    %v1210 = vor.u32 %v1208, %v1209
    %v1211 = vshll.u32 2475754826, %v1205
    %v1212 = vshrl.u32 2131351028, %v1206
    %v1213 = vor.u32 %v1211, %v1212
    %v1214 = vshll.u32 2131351028, %v1205
    %v1215 = vshrl.u32 2102212464, %v1206
    %v1216 = vor.u32 %v1214, %v1215
    %v1217 = vshll.u32 2102212464, %v1205
    %v1218 = vshrl.u32 920167782, %v1206
    %v1219 = vor.u32 %v1217, %v1218
    %v1220 = vshll.u32 920167782, %v1205
    %v1221 = vshrl.u32 1326507024, %v1206
    %v1222 = vor.u32 %v1220, %v1221
    %vm1223 = vcmp.lt.s32.totalorder %v1204, 1
    %vm1224 = vcmp.lt.s32.totalorder %v1204, 2
    %vm1225 = vcmp.lt.s32.totalorder %v1204, 3
    %vm1226 = vcmp.lt.s32.totalorder %v1204, 4
    %v1227 = vsel %vm1223, %v1207, %v1210
    %v1228 = vsel %vm1226, %v1216, 2102212464
    %v1229 = vsel %vm1225, %v1213, %v1228
    %v1230 = vsel %vm1224, %v1227, %v1229
    %v1231 = vsel %vm1223, %v1210, %v1213
    %v1232 = vsel %vm1226, %v1219, 920167782
    %v1233 = vsel %vm1225, %v1216, %v1232
    %v1234 = vsel %vm1224, %v1231, %v1233
    %v1235 = vsel %vm1223, %v1213, %v1216
    %v1236 = vsel %vm1226, %v1222, 1326507024
    %v1237 = vsel %vm1225, %v1219, %v1236
    %v1238 = vsel %vm1224, %v1235, %v1237
    %v1239 = vshll.u32 %v1199, 8
    %v1240 = vmul.u32.u64.compose %v1239, %v1238
    %v1241 = vextract.low.u32 %v1240
    %v1242 = vextract.high.u32 %v1240
    %v1243 = vmul.u32.u64.compose %v1239, %v1234
    %v1244 = vextract.low.u32 %v1243
    %v1245 = vextract.high.u32 %v1243
    %v1246 = vmul.u32 %v1239, %v1230
    %v1247 = vadd.s32 %v1242, %v1244
    %vm1248 = vc.u32 %v1242, %v1244
    %v1249 = vadd.s32 %v1245, 1
    %v1250 = vsel %vm1248, %v1249, %v1245
    %v1251 = vadd.s32 %v1246, %v1250
    %v1252 = vadd.s32 %v1251, 536870912
    %v1253 = vshrl.u32 %v1252, 30
    %v1254 = vshll.u32 %v1253, 30
    %v1255 = vsub.s32 %v1251, %v1254
    %vm1256 = vcmp.lt.s32.totalorder %v1255, 0
    %v1257 = vsub.s32 0, %v1255
    %v1258 = vsel %vm1256, %v1257, %v1255
    %v1259 = vclz %v1258
    %v1260 = vsub.s32 %v1259, 2
    %vm1261 = vcmp.gt.s32.totalorder 0, %v1260
    %v1262 = vsel %vm1261, 0, %v1260
    %v1263 = vsub.s32 32, %v1262
    %v1264 = vshll.u32 %v1255, %v1262
    %v1265 = vshrl.u32 %v1247, %v1263
    %v1266 = vor.u32 %v1264, %v1265
    %v1267 = vsub.s32 4294967266, %v1262
    %v1268 = vadd.s32 %v1267, 127
    %v1269 = vshll.u32 %v1268, 23
    %v1270 = vor.u32 4788187, %v1269
    %v1271 = vand.u32 2147483647, %v1270
    %v1273 = vcvt.s32.f32 %v1266
    %v1274 = vmul.f32 %v1273, %v1271
    %v1275 = vxor.u32 %v1274, 2147483648
    %v1276 = vsel %vm1193, %v1275, %v1274
    %v1277 = vsub.s32 4, %v1253
    %v1278 = vsel %vm1193, %v1277, %v1253
    %v1279 = vsel %vm1192, %v876, %v1276
    %v1280 = vsel %vm1192, 0, %v1278
    %v1281 = vcosq.f32.pop %v1279
    %v1282 = vsinq.f32.pop %v1279
    %vm1283 = vweird.f32 %v876
    %v1284 = vadd.s32 %v1280, 3
    %v1285 = vand.u32 %v1284, 3
    %vm1286 = vcmp.lt.s32.totalorder %v1285, 2
    %vm1287 = vcmp.eq.s32.totalorder %v1285, 0
    %v1288 = vxor.u32 %v1282, 2147483648
    %v1289 = vsel %vm1287, %v1281, %v1288
    %vm1290 = vcmp.eq.s32.totalorder %v1285, 2
    %v1291 = vxor.u32 %v1281, 2147483648
    %v1292 = vsel %vm1290, %v1291, %v1282
    %v1293 = vsel %vm1286, %v1289, %v1292
    %v1294 = vsel %vm1283, nan, %v1293
    %v1295 = vld [vmem:[%s1 + $0x20] sm:$0xff]
    %v1296 = vld [vmem:[%s1 + $0x28] sm:$0xff]
    %v1297 = vld [vmem:[%s1 + $0x30] sm:$0xff]
    %v1298 = vld [vmem:[%s1 + $0x38] sm:$0xff]
    %1300 = vset.pattern.permute.xlu0 32
    %1301 = vperm.xlu0 %1300, %v1295
    %v1302 = vpop.permute.xlu0 %1301
    %1305 = vset.pattern.permute.xlu0 32
    %1306 = vperm.xlu0 %1305, %v1296
    %v1307 = vpop.permute.xlu0 %1306
    %1310 = vset.pattern.permute.xlu0 32
    %1311 = vperm.xlu0 %1310, %v1297
    %v1312 = vpop.permute.xlu0 %1311
    %1315 = vset.pattern.permute.xlu0 32
    %1316 = vperm.xlu0 %1315, %v1298
    %v1317 = vpop.permute.xlu0 %1316
    %vm1319 = vcmask 261120
    %v1320 = vsel %vm1319, %v1295, 0
    %v1322 = vsel %vm1319, %v1296, 0
    %v1324 = vsel %vm1319, %v1297, 0
    %v1326 = vsel %vm1319, %v1298, 0
    %1328 = vmatprep.subr.mxu0 0.0
    %v1329 = vand.u32 %v982, 4294901760
    %1330 = vmatpush1.msra.mxu0 %v1329
    %1331 = vmatprep.subr.mxu0 0.0
    %v1332 = vand.u32 %v1086, 4294901760
    %1333 = vmatpush1.msra.mxu0 %v1332
    %1334 = vmatprep.subr.mxu0 0.0
    %v1335 = vand.u32 %v1190, 4294901760
    %1336 = vmatpush1.msra.mxu0 %v1335
    %1337 = vmatprep.subr.mxu0 0.0
    %v1338 = vand.u32 %v1294, 4294901760
    %1339 = vmatpush1.msra.mxu0 %v1338
    %1340 = vmatprep.subr.mxu0 0.0
    %1341 = vmatpush1.msra.mxu0 0.0
    %1342 = vmatprep.subr.mxu0 0.0
    %1343 = vmatpush1.msra.mxu0 0.0
    %1344 = vmatprep.subr.mxu0 0.0
    %1345 = vmatpush1.msra.mxu0 0.0
    %1346 = vmatprep.subr.mxu0 0.0
    %1347 = vmatpush1.msra.mxu0 0.0
    %1348 = vmatprep.subr.mxu0 0.0
    %1349 = vmatpush1.msra.mxu0 0.0
    %1350 = vmatprep.subr.mxu0 0.0
    %1351 = vmatpush1.msra.mxu0 0.0
    %1352 = vmatprep.subr.mxu0 0.0
    %1353 = vmatpush1.msra.mxu0 0.0
    %1354 = vmatprep.subr.mxu0 0.0
    %1355 = vmatpush1.msra.mxu0 0.0
    %1356 = vmatprep.subr.mxu0 0.0
    %1357 = vmatpush1.msra.mxu0 0.0
    %1358 = vmatprep.subr.mxu0 0.0
    %1359 = vmatpush1.msra.mxu0 0.0
    %1360 = vmatprep.subr.mxu0 0.0
    %1361 = vmatpush1.msra.mxu0 0.0
    %1362 = vmatprep.subr.mxu0 0.0
    %1363 = vmatpush1.msra.mxu0 0.0
    %1364 = vmatprep.subr.mxu0 0.0
    %1365 = vmatpush1.msra.mxu0 0.0
    %1366 = vmatprep.subr.mxu0 0.0
    %1367 = vmatpush1.msra.mxu0 0.0
    %1368 = vmatprep.subr.mxu0 0.0
    %1369 = vmatpush1.msra.mxu0 0.0
    %1370 = vmatprep.subr.mxu0 0.0
    %1371 = vmatpush1.msra.mxu0 0.0
    %1372 = vmatprep.subr.mxu0 0.0
    %1373 = vmatpush1.msra.mxu0 0.0
    %1374 = vmatprep.subr.mxu0 0.0
    %1375 = vmatpush1.msra.mxu0 0.0
    %1376 = vmatprep.subr.mxu0 0.0
    %1377 = vmatpush1.msra.mxu0 0.0
    %1378 = vmatprep.subr.mxu0 0.0
    %1379 = vmatpush1.msra.mxu0 0.0
    %1380 = vmatprep.subr.mxu0 0.0
    %1381 = vmatpush1.msra.mxu0 0.0
    %1382 = vmatprep.subr.mxu0 0.0
    %1383 = vmatpush1.msra.mxu0 0.0
    %1384 = vmatprep.subr.mxu0 0.0
    %1385 = vmatpush1.msra.mxu0 0.0
    %1386 = vmatprep.subr.mxu0 0.0
    %1387 = vmatpush1.msra.mxu0 0.0
    %1388 = vmatprep.subr.mxu0 0.0
    %1389 = vmatpush1.msra.mxu0 0.0
    %1390 = vmatprep.subr.mxu0 0.0
    %1391 = vmatpush1.msra.mxu0 0.0
    %1392 = vmatprep.subr.mxu0 0.0
    %1393 = vmatpush1.msra.mxu0 0.0
    %1394 = vmatprep.subr.mxu0 0.0
    %1395 = vmatpush1.msra.mxu0 0.0
    %1396 = vmatprep.mubr.f32.mxu0 0.0
    %v1397 = vand.u32 %v1320, 4294901760
    %v1398 = vsub.f32 %v1320, %v1397
    %v1399 = vand.u32 %v1398, 4294901760
    %v1400 = vsub.f32 %v1398, %v1399
    %v1401 = vand.u32 %v1400, 4294901760
    %1402 = vmatmul.mubr.f32.gmra.mrb[0].mxu0 %v1401
    %v1403 = vpop.f32.mrb[0].mxu0
    %v1404 = vadd.f32 %v1302, %v1403
    %v1405 = vpop.f32.mrb[0].mxu0
    %1406 = vmatprep.mubr.f32.mxu0 0.0
    %v1407 = vand.u32 %v1322, 4294901760
    %v1408 = vsub.f32 %v1322, %v1407
    %v1409 = vand.u32 %v1408, 4294901760
    %v1410 = vsub.f32 %v1408, %v1409
    %v1411 = vand.u32 %v1410, 4294901760
    %1412 = vmatmul.mubr.f32.gmra.mrb[0].mxu0 %v1411
    %v1413 = vpop.f32.mrb[0].mxu0
    %v1414 = vadd.f32 %v1307, %v1413
    %v1415 = vpop.f32.mrb[0].mxu0
    %1416 = vmatprep.mubr.f32.mxu0 0.0
    %v1417 = vand.u32 %v1324, 4294901760
    %v1418 = vsub.f32 %v1324, %v1417
    %v1419 = vand.u32 %v1418, 4294901760
    %v1420 = vsub.f32 %v1418, %v1419
    %v1421 = vand.u32 %v1420, 4294901760
    %1422 = vmatmul.mubr.f32.gmra.mrb[0].mxu0 %v1421
    %v1423 = vpop.f32.mrb[0].mxu0
    %v1424 = vadd.f32 %v1312, %v1423
    %v1425 = vpop.f32.mrb[0].mxu0
    %1426 = vmatprep.mubr.f32.mxu0 0.0
    %v1427 = vand.u32 %v1326, 4294901760
    %v1428 = vsub.f32 %v1326, %v1427
    %v1429 = vand.u32 %v1428, 4294901760
    %v1430 = vsub.f32 %v1428, %v1429
    %v1431 = vand.u32 %v1430, 4294901760
    %1432 = vmatmul.mubr.f32.gmra.mrb[0].mxu0 %v1431
    %v1433 = vpop.f32.mrb[0].mxu0
    %v1434 = vadd.f32 %v1317, %v1433
    %v1435 = vpop.f32.mrb[0].mxu0
    %1436 = vdwg.mxu0
    %1437 = vmatprep.subr.mxu0 0.0
    %v1438 = vand.u32 %v982, 4294901760
    %v1439 = vsub.f32 %v982, %v1438
    %v1440 = vand.u32 %v1439, 4294901760
    %v1441 = vsub.f32 %v1439, %v1440
    %v1442 = vand.u32 %v1441, 4294901760
    %1443 = vmatpush1.msra.mxu0 %v1442
    %1444 = vmatprep.subr.mxu0 0.0
    %v1445 = vand.u32 %v1086, 4294901760
    %v1446 = vsub.f32 %v1086, %v1445
    %v1447 = vand.u32 %v1446, 4294901760
    %v1448 = vsub.f32 %v1446, %v1447
    %v1449 = vand.u32 %v1448, 4294901760
    %1450 = vmatpush1.msra.mxu0 %v1449
    %1451 = vmatprep.subr.mxu0 0.0
    %v1452 = vand.u32 %v1190, 4294901760
    %v1453 = vsub.f32 %v1190, %v1452
    %v1454 = vand.u32 %v1453, 4294901760
    %v1455 = vsub.f32 %v1453, %v1454
    %v1456 = vand.u32 %v1455, 4294901760
    %1457 = vmatpush1.msra.mxu0 %v1456
    %1458 = vmatprep.subr.mxu0 0.0
    %v1459 = vand.u32 %v1294, 4294901760
    %v1460 = vsub.f32 %v1294, %v1459
    %v1461 = vand.u32 %v1460, 4294901760
    %v1462 = vsub.f32 %v1460, %v1461
    %v1463 = vand.u32 %v1462, 4294901760
    %1464 = vmatpush1.msra.mxu0 %v1463
    %1465 = vmatprep.subr.mxu0 0.0
    %1466 = vmatpush1.msra.mxu0 0.0
    %1467 = vmatprep.subr.mxu0 0.0
    %1468 = vmatpush1.msra.mxu0 0.0
    %1469 = vmatprep.subr.mxu0 0.0
    %1470 = vmatpush1.msra.mxu0 0.0
    %1471 = vmatprep.subr.mxu0 0.0
    %1472 = vmatpush1.msra.mxu0 0.0
    %1473 = vmatprep.subr.mxu0 0.0
    %1474 = vmatpush1.msra.mxu0 0.0
    %1475 = vmatprep.subr.mxu0 0.0
    %1476 = vmatpush1.msra.mxu0 0.0
    %1477 = vmatprep.subr.mxu0 0.0
    %1478 = vmatpush1.msra.mxu0 0.0
    %1479 = vmatprep.subr.mxu0 0.0
    %1480 = vmatpush1.msra.mxu0 0.0
    %1481 = vmatprep.subr.mxu0 0.0
    %1482 = vmatpush1.msra.mxu0 0.0
    %1483 = vmatprep.subr.mxu0 0.0
    %1484 = vmatpush1.msra.mxu0 0.0
    %1485 = vmatprep.subr.mxu0 0.0
    %1486 = vmatpush1.msra.mxu0 0.0
    %1487 = vmatprep.subr.mxu0 0.0
    %1488 = vmatpush1.msra.mxu0 0.0
    %1489 = vmatprep.subr.mxu0 0.0
    %1490 = vmatpush1.msra.mxu0 0.0
    %1491 = vmatprep.subr.mxu0 0.0
    %1492 = vmatpush1.msra.mxu0 0.0
    %1493 = vmatprep.subr.mxu0 0.0
    %1494 = vmatpush1.msra.mxu0 0.0
    %1495 = vmatprep.subr.mxu0 0.0
    %1496 = vmatpush1.msra.mxu0 0.0
    %1497 = vmatprep.subr.mxu0 0.0
    %1498 = vmatpush1.msra.mxu0 0.0
    %1499 = vmatprep.subr.mxu0 0.0
    %1500 = vmatpush1.msra.mxu0 0.0
    %1501 = vmatprep.subr.mxu0 0.0
    %1502 = vmatpush1.msra.mxu0 0.0
    %1503 = vmatprep.subr.mxu0 0.0
    %1504 = vmatpush1.msra.mxu0 0.0
    %1505 = vmatprep.subr.mxu0 0.0
    %1506 = vmatpush1.msra.mxu0 0.0
    %1507 = vmatprep.subr.mxu0 0.0
    %1508 = vmatpush1.msra.mxu0 0.0
    %1509 = vmatprep.subr.mxu0 0.0
    %1510 = vmatpush1.msra.mxu0 0.0
    %1511 = vmatprep.subr.mxu0 0.0
    %1512 = vmatpush1.msra.mxu0 0.0
    %1513 = vmatprep.subr.mxu0 0.0
    %1514 = vmatpush1.msra.mxu0 0.0
    %1515 = vmatprep.subr.mxu0 0.0
    %1516 = vmatpush1.msra.mxu0 0.0
    %1517 = vmatprep.subr.mxu0 0.0
    %1518 = vmatpush1.msra.mxu0 0.0
    %1519 = vmatprep.subr.mxu0 0.0
    %1520 = vmatpush1.msra.mxu0 0.0
    %1521 = vmatprep.mubr.f32.mxu0 0.0
    %v1522 = vand.u32 %v1320, 4294901760
    %1523 = vmatmul.mubr.f32.gmra.mrb[0].mxu0 %v1522
    %v1524 = vpop.f32.mrb[0].mxu0
    %v1525 = vadd.f32 %v1404, %v1524
    %v1526 = vpop.f32.mrb[0].mxu0
    %1527 = vmatprep.mubr.f32.mxu0 0.0
    %v1528 = vand.u32 %v1322, 4294901760
    %1529 = vmatmul.mubr.f32.gmra.mrb[0].mxu0 %v1528
    %v1530 = vpop.f32.mrb[0].mxu0
    %v1531 = vadd.f32 %v1414, %v1530
    %v1532 = vpop.f32.mrb[0].mxu0
    %1533 = vmatprep.mubr.f32.mxu0 0.0
    %v1534 = vand.u32 %v1324, 4294901760
    %1535 = vmatmul.mubr.f32.gmra.mrb[0].mxu0 %v1534
    %v1536 = vpop.f32.mrb[0].mxu0
    %v1537 = vadd.f32 %v1424, %v1536
    %v1538 = vpop.f32.mrb[0].mxu0
    %1539 = vmatprep.mubr.f32.mxu0 0.0
    %v1540 = vand.u32 %v1326, 4294901760
    %1541 = vmatmul.mubr.f32.gmra.mrb[0].mxu0 %v1540
    %v1542 = vpop.f32.mrb[0].mxu0
    %v1543 = vadd.f32 %v1434, %v1542
    %v1544 = vpop.f32.mrb[0].mxu0
    %1545 = vdwg.mxu0
    %1546 = vmatprep.subr.mxu0 0.0
    %v1547 = vand.u32 %v982, 4294901760
    %v1548 = vsub.f32 %v982, %v1547
    %1549 = vmatpush1.msra.mxu0 %v1548
    %1550 = vmatprep.subr.mxu0 0.0
    %v1551 = vand.u32 %v1086, 4294901760
    %v1552 = vsub.f32 %v1086, %v1551
    %1553 = vmatpush1.msra.mxu0 %v1552
    %1554 = vmatprep.subr.mxu0 0.0
    %v1555 = vand.u32 %v1190, 4294901760
    %v1556 = vsub.f32 %v1190, %v1555
    %1557 = vmatpush1.msra.mxu0 %v1556
    %1558 = vmatprep.subr.mxu0 0.0
    %v1559 = vand.u32 %v1294, 4294901760
    %v1560 = vsub.f32 %v1294, %v1559
    %1561 = vmatpush1.msra.mxu0 %v1560
    %1562 = vmatprep.subr.mxu0 0.0
    %1563 = vmatpush1.msra.mxu0 0.0
    %1564 = vmatprep.subr.mxu0 0.0
    %1565 = vmatpush1.msra.mxu0 0.0
    %1566 = vmatprep.subr.mxu0 0.0
    %1567 = vmatpush1.msra.mxu0 0.0
    %1568 = vmatprep.subr.mxu0 0.0
    %1569 = vmatpush1.msra.mxu0 0.0
    %1570 = vmatprep.subr.mxu0 0.0
    %1571 = vmatpush1.msra.mxu0 0.0
    %1572 = vmatprep.subr.mxu0 0.0
    %1573 = vmatpush1.msra.mxu0 0.0
    %1574 = vmatprep.subr.mxu0 0.0
    %1575 = vmatpush1.msra.mxu0 0.0
    %1576 = vmatprep.subr.mxu0 0.0
    %1577 = vmatpush1.msra.mxu0 0.0
    %1578 = vmatprep.subr.mxu0 0.0
    %1579 = vmatpush1.msra.mxu0 0.0
    %1580 = vmatprep.subr.mxu0 0.0
    %1581 = vmatpush1.msra.mxu0 0.0
    %1582 = vmatprep.subr.mxu0 0.0
    %1583 = vmatpush1.msra.mxu0 0.0
    %1584 = vmatprep.subr.mxu0 0.0
    %1585 = vmatpush1.msra.mxu0 0.0
    %1586 = vmatprep.subr.mxu0 0.0
    %1587 = vmatpush1.msra.mxu0 0.0
    %1588 = vmatprep.subr.mxu0 0.0
    %1589 = vmatpush1.msra.mxu0 0.0
    %1590 = vmatprep.subr.mxu0 0.0
    %1591 = vmatpush1.msra.mxu0 0.0
    %1592 = vmatprep.subr.mxu0 0.0
    %1593 = vmatpush1.msra.mxu0 0.0
    %1594 = vmatprep.subr.mxu0 0.0
    %1595 = vmatpush1.msra.mxu0 0.0
    %1596 = vmatprep.subr.mxu0 0.0
    %1597 = vmatpush1.msra.mxu0 0.0
    %1598 = vmatprep.subr.mxu0 0.0
    %1599 = vmatpush1.msra.mxu0 0.0
    %1600 = vmatprep.subr.mxu0 0.0
    %1601 = vmatpush1.msra.mxu0 0.0
    %1602 = vmatprep.subr.mxu0 0.0
    %1603 = vmatpush1.msra.mxu0 0.0
    %1604 = vmatprep.subr.mxu0 0.0
    %1605 = vmatpush1.msra.mxu0 0.0
    %1606 = vmatprep.subr.mxu0 0.0
    %1607 = vmatpush1.msra.mxu0 0.0
    %1608 = vmatprep.subr.mxu0 0.0
    %1609 = vmatpush1.msra.mxu0 0.0
    %1610 = vmatprep.subr.mxu0 0.0
    %1611 = vmatpush1.msra.mxu0 0.0
    %1612 = vmatprep.subr.mxu0 0.0
    %1613 = vmatpush1.msra.mxu0 0.0
    %1614 = vmatprep.subr.mxu0 0.0
    %1615 = vmatpush1.msra.mxu0 0.0
    %1616 = vmatprep.subr.mxu0 0.0
    %1617 = vmatpush1.msra.mxu0 0.0
    %1618 = vmatprep.mubr.f32.mxu0 0.0
    %v1619 = vand.u32 %v1320, 4294901760
    %v1620 = vsub.f32 %v1320, %v1619
    %1621 = vmatmul.mubr.f32.gmra.mrb[0].mxu0 %v1620
    %v1622 = vpop.f32.mrb[0].mxu0
    %v1623 = vadd.f32 %v1525, %v1622
    %v1624 = vpop.f32.mrb[0].mxu0
    %1625 = vmatprep.mubr.f32.mxu0 0.0
    %v1626 = vand.u32 %v1322, 4294901760
    %v1627 = vsub.f32 %v1322, %v1626
    %1628 = vmatmul.mubr.f32.gmra.mrb[0].mxu0 %v1627
    %v1629 = vpop.f32.mrb[0].mxu0
    %v1630 = vadd.f32 %v1531, %v1629
    %v1631 = vpop.f32.mrb[0].mxu0
    %1632 = vmatprep.mubr.f32.mxu0 0.0
    %v1633 = vand.u32 %v1324, 4294901760
    %v1634 = vsub.f32 %v1324, %v1633
    %1635 = vmatmul.mubr.f32.gmra.mrb[0].mxu0 %v1634
    %v1636 = vpop.f32.mrb[0].mxu0
    %v1637 = vadd.f32 %v1537, %v1636
    %v1638 = vpop.f32.mrb[0].mxu0
    %1639 = vmatprep.mubr.f32.mxu0 0.0
    %v1640 = vand.u32 %v1326, 4294901760
    %v1641 = vsub.f32 %v1326, %v1640
    %1642 = vmatmul.mubr.f32.gmra.mrb[0].mxu0 %v1641
    %v1643 = vpop.f32.mrb[0].mxu0
    %v1644 = vadd.f32 %v1543, %v1643
    %v1645 = vpop.f32.mrb[0].mxu0
    %1646 = vdwg.mxu0
    %1647 = vmatprep.subr.mxu0 0.0
    %v1648 = vand.u32 %v982, 4294901760
    %1649 = vmatpush1.msra.mxu0 %v1648
    %1650 = vmatprep.subr.mxu0 0.0
    %v1651 = vand.u32 %v1086, 4294901760
    %1652 = vmatpush1.msra.mxu0 %v1651
    %1653 = vmatprep.subr.mxu0 0.0
    %v1654 = vand.u32 %v1190, 4294901760
    %1655 = vmatpush1.msra.mxu0 %v1654
    %1656 = vmatprep.subr.mxu0 0.0
    %v1657 = vand.u32 %v1294, 4294901760
    %1658 = vmatpush1.msra.mxu0 %v1657
    %1659 = vmatprep.subr.mxu0 0.0
    %1660 = vmatpush1.msra.mxu0 0.0
    %1661 = vmatprep.subr.mxu0 0.0
    %1662 = vmatpush1.msra.mxu0 0.0
    %1663 = vmatprep.subr.mxu0 0.0
    %1664 = vmatpush1.msra.mxu0 0.0
    %1665 = vmatprep.subr.mxu0 0.0
    %1666 = vmatpush1.msra.mxu0 0.0
    %1667 = vmatprep.subr.mxu0 0.0
    %1668 = vmatpush1.msra.mxu0 0.0
    %1669 = vmatprep.subr.mxu0 0.0
    %1670 = vmatpush1.msra.mxu0 0.0
    %1671 = vmatprep.subr.mxu0 0.0
    %1672 = vmatpush1.msra.mxu0 0.0
    %1673 = vmatprep.subr.mxu0 0.0
    %1674 = vmatpush1.msra.mxu0 0.0
    %1675 = vmatprep.subr.mxu0 0.0
    %1676 = vmatpush1.msra.mxu0 0.0
    %1677 = vmatprep.subr.mxu0 0.0
    %1678 = vmatpush1.msra.mxu0 0.0
    %1679 = vmatprep.subr.mxu0 0.0
    %1680 = vmatpush1.msra.mxu0 0.0
    %1681 = vmatprep.subr.mxu0 0.0
    %1682 = vmatpush1.msra.mxu0 0.0
    %1683 = vmatprep.subr.mxu0 0.0
    %1684 = vmatpush1.msra.mxu0 0.0
    %1685 = vmatprep.subr.mxu0 0.0
    %1686 = vmatpush1.msra.mxu0 0.0
    %1687 = vmatprep.subr.mxu0 0.0
    %1688 = vmatpush1.msra.mxu0 0.0
    %1689 = vmatprep.subr.mxu0 0.0
    %1690 = vmatpush1.msra.mxu0 0.0
    %1691 = vmatprep.subr.mxu0 0.0
    %1692 = vmatpush1.msra.mxu0 0.0
    %1693 = vmatprep.subr.mxu0 0.0
    %1694 = vmatpush1.msra.mxu0 0.0
    %1695 = vmatprep.subr.mxu0 0.0
    %1696 = vmatpush1.msra.mxu0 0.0
    %1697 = vmatprep.subr.mxu0 0.0
    %1698 = vmatpush1.msra.mxu0 0.0
    %1699 = vmatprep.subr.mxu0 0.0
    %1700 = vmatpush1.msra.mxu0 0.0
    %1701 = vmatprep.subr.mxu0 0.0
    %1702 = vmatpush1.msra.mxu0 0.0
    %1703 = vmatprep.subr.mxu0 0.0
    %1704 = vmatpush1.msra.mxu0 0.0
    %1705 = vmatprep.subr.mxu0 0.0
    %1706 = vmatpush1.msra.mxu0 0.0
    %1707 = vmatprep.subr.mxu0 0.0
    %1708 = vmatpush1.msra.mxu0 0.0
    %1709 = vmatprep.subr.mxu0 0.0
    %1710 = vmatpush1.msra.mxu0 0.0
    %1711 = vmatprep.subr.mxu0 0.0
    %1712 = vmatpush1.msra.mxu0 0.0
    %1713 = vmatprep.subr.mxu0 0.0
    %1714 = vmatpush1.msra.mxu0 0.0
    %1715 = vmatprep.mubr.f32.mxu0 0.0
    %v1716 = vand.u32 %v1320, 4294901760
    %v1717 = vsub.f32 %v1320, %v1716
    %v1718 = vand.u32 %v1717, 4294901760
    %1719 = vmatmul.mubr.f32.gmra.mrb[0].mxu0 %v1718
    %v1720 = vpop.f32.mrb[0].mxu0
    %v1721 = vadd.f32 %v1623, %v1720
    %v1722 = vpop.f32.mrb[0].mxu0
    %1723 = vmatprep.mubr.f32.mxu0 0.0
    %v1724 = vand.u32 %v1322, 4294901760
    %v1725 = vsub.f32 %v1322, %v1724
    %v1726 = vand.u32 %v1725, 4294901760
    %1727 = vmatmul.mubr.f32.gmra.mrb[0].mxu0 %v1726
    %v1728 = vpop.f32.mrb[0].mxu0
    %v1729 = vadd.f32 %v1630, %v1728
    %v1730 = vpop.f32.mrb[0].mxu0
    %1731 = vmatprep.mubr.f32.mxu0 0.0
    %v1732 = vand.u32 %v1324, 4294901760
    %v1733 = vsub.f32 %v1324, %v1732
    %v1734 = vand.u32 %v1733, 4294901760
    %1735 = vmatmul.mubr.f32.gmra.mrb[0].mxu0 %v1734
    %v1736 = vpop.f32.mrb[0].mxu0
    %v1737 = vadd.f32 %v1637, %v1736
    %v1738 = vpop.f32.mrb[0].mxu0
    %1739 = vmatprep.mubr.f32.mxu0 0.0
    %v1740 = vand.u32 %v1326, 4294901760
    %v1741 = vsub.f32 %v1326, %v1740
    %v1742 = vand.u32 %v1741, 4294901760
    %1743 = vmatmul.mubr.f32.gmra.mrb[0].mxu0 %v1742
    %v1744 = vpop.f32.mrb[0].mxu0
    %v1745 = vadd.f32 %v1644, %v1744
    %v1746 = vpop.f32.mrb[0].mxu0
    %1747 = vdwg.mxu0
    %1748 = vmatprep.subr.mxu0 0.0
    %v1749 = vand.u32 %v982, 4294901760
    %v1750 = vsub.f32 %v982, %v1749
    %v1751 = vand.u32 %v1750, 4294901760
    %1752 = vmatpush1.msra.mxu0 %v1751
    %1753 = vmatprep.subr.mxu0 0.0
    %v1754 = vand.u32 %v1086, 4294901760
    %v1755 = vsub.f32 %v1086, %v1754
    %v1756 = vand.u32 %v1755, 4294901760
    %1757 = vmatpush1.msra.mxu0 %v1756
    %1758 = vmatprep.subr.mxu0 0.0
    %v1759 = vand.u32 %v1190, 4294901760
    %v1760 = vsub.f32 %v1190, %v1759
    %v1761 = vand.u32 %v1760, 4294901760
    %1762 = vmatpush1.msra.mxu0 %v1761
    %1763 = vmatprep.subr.mxu0 0.0
    %v1764 = vand.u32 %v1294, 4294901760
    %v1765 = vsub.f32 %v1294, %v1764
    %v1766 = vand.u32 %v1765, 4294901760
    %1767 = vmatpush1.msra.mxu0 %v1766
    %1768 = vmatprep.subr.mxu0 0.0
    %1769 = vmatpush1.msra.mxu0 0.0
    %1770 = vmatprep.subr.mxu0 0.0
    %1771 = vmatpush1.msra.mxu0 0.0
    %1772 = vmatprep.subr.mxu0 0.0
    %1773 = vmatpush1.msra.mxu0 0.0
    %1774 = vmatprep.subr.mxu0 0.0
    %1775 = vmatpush1.msra.mxu0 0.0
    %1776 = vmatprep.subr.mxu0 0.0
    %1777 = vmatpush1.msra.mxu0 0.0
    %1778 = vmatprep.subr.mxu0 0.0
    %1779 = vmatpush1.msra.mxu0 0.0
    %1780 = vmatprep.subr.mxu0 0.0
    %1781 = vmatpush1.msra.mxu0 0.0
    %1782 = vmatprep.subr.mxu0 0.0
    %1783 = vmatpush1.msra.mxu0 0.0
    %1784 = vmatprep.subr.mxu0 0.0
    %1785 = vmatpush1.msra.mxu0 0.0
    %1786 = vmatprep.subr.mxu0 0.0
    %1787 = vmatpush1.msra.mxu0 0.0
    %1788 = vmatprep.subr.mxu0 0.0
    %1789 = vmatpush1.msra.mxu0 0.0
    %1790 = vmatprep.subr.mxu0 0.0
    %1791 = vmatpush1.msra.mxu0 0.0
    %1792 = vmatprep.subr.mxu0 0.0
    %1793 = vmatpush1.msra.mxu0 0.0
    %1794 = vmatprep.subr.mxu0 0.0
    %1795 = vmatpush1.msra.mxu0 0.0
    %1796 = vmatprep.subr.mxu0 0.0
    %1797 = vmatpush1.msra.mxu0 0.0
    %1798 = vmatprep.subr.mxu0 0.0
    %1799 = vmatpush1.msra.mxu0 0.0
    %1800 = vmatprep.subr.mxu0 0.0
    %1801 = vmatpush1.msra.mxu0 0.0
    %1802 = vmatprep.subr.mxu0 0.0
    %1803 = vmatpush1.msra.mxu0 0.0
    %1804 = vmatprep.subr.mxu0 0.0
    %1805 = vmatpush1.msra.mxu0 0.0
    %1806 = vmatprep.subr.mxu0 0.0
    %1807 = vmatpush1.msra.mxu0 0.0
    %1808 = vmatprep.subr.mxu0 0.0
    %1809 = vmatpush1.msra.mxu0 0.0
    %1810 = vmatprep.subr.mxu0 0.0
    %1811 = vmatpush1.msra.mxu0 0.0
    %1812 = vmatprep.subr.mxu0 0.0
    %1813 = vmatpush1.msra.mxu0 0.0
    %1814 = vmatprep.subr.mxu0 0.0
    %1815 = vmatpush1.msra.mxu0 0.0
    %1816 = vmatprep.subr.mxu0 0.0
    %1817 = vmatpush1.msra.mxu0 0.0
    %1818 = vmatprep.subr.mxu0 0.0
    %1819 = vmatpush1.msra.mxu0 0.0
    %1820 = vmatprep.subr.mxu0 0.0
    %1821 = vmatpush1.msra.mxu0 0.0
    %1822 = vmatprep.subr.mxu0 0.0
    %1823 = vmatpush1.msra.mxu0 0.0
    %1824 = vmatprep.mubr.f32.mxu0 0.0
    %v1825 = vand.u32 %v1320, 4294901760
    %1826 = vmatmul.mubr.f32.gmra.mrb[0].mxu0 %v1825
    %v1827 = vpop.f32.mrb[0].mxu0
    %v1828 = vadd.f32 %v1721, %v1827
    %v1829 = vpop.f32.mrb[0].mxu0
    %1830 = vmatprep.mubr.f32.mxu0 0.0
    %v1831 = vand.u32 %v1322, 4294901760
    %1832 = vmatmul.mubr.f32.gmra.mrb[0].mxu0 %v1831
    %v1833 = vpop.f32.mrb[0].mxu0
    %v1834 = vadd.f32 %v1729, %v1833
    %v1835 = vpop.f32.mrb[0].mxu0
    %1836 = vmatprep.mubr.f32.mxu0 0.0
    %v1837 = vand.u32 %v1324, 4294901760
    %1838 = vmatmul.mubr.f32.gmra.mrb[0].mxu0 %v1837
    %v1839 = vpop.f32.mrb[0].mxu0
    %v1840 = vadd.f32 %v1737, %v1839
    %v1841 = vpop.f32.mrb[0].mxu0
    %1842 = vmatprep.mubr.f32.mxu0 0.0
    %v1843 = vand.u32 %v1326, 4294901760
    %1844 = vmatmul.mubr.f32.gmra.mrb[0].mxu0 %v1843
    %v1845 = vpop.f32.mrb[0].mxu0
    %v1846 = vadd.f32 %v1745, %v1845
    %v1847 = vpop.f32.mrb[0].mxu0
    %1848 = vdwg.mxu0
    %1849 = vmatprep.subr.mxu0 0.0
    %v1850 = vand.u32 %v982, 4294901760
    %1851 = vmatpush1.msra.mxu0 %v1850
    %1852 = vmatprep.subr.mxu0 0.0
    %v1853 = vand.u32 %v1086, 4294901760
    %1854 = vmatpush1.msra.mxu0 %v1853
    %1855 = vmatprep.subr.mxu0 0.0
    %v1856 = vand.u32 %v1190, 4294901760
    %1857 = vmatpush1.msra.mxu0 %v1856
    %1858 = vmatprep.subr.mxu0 0.0
    %v1859 = vand.u32 %v1294, 4294901760
    %1860 = vmatpush1.msra.mxu0 %v1859
    %1861 = vmatprep.subr.mxu0 0.0
    %1862 = vmatpush1.msra.mxu0 0.0
    %1863 = vmatprep.subr.mxu0 0.0
    %1864 = vmatpush1.msra.mxu0 0.0
    %1865 = vmatprep.subr.mxu0 0.0
    %1866 = vmatpush1.msra.mxu0 0.0
    %1867 = vmatprep.subr.mxu0 0.0
    %1868 = vmatpush1.msra.mxu0 0.0
    %1869 = vmatprep.subr.mxu0 0.0
    %1870 = vmatpush1.msra.mxu0 0.0
    %1871 = vmatprep.subr.mxu0 0.0
    %1872 = vmatpush1.msra.mxu0 0.0
    %1873 = vmatprep.subr.mxu0 0.0
    %1874 = vmatpush1.msra.mxu0 0.0
    %1875 = vmatprep.subr.mxu0 0.0
    %1876 = vmatpush1.msra.mxu0 0.0
    %1877 = vmatprep.subr.mxu0 0.0
    %1878 = vmatpush1.msra.mxu0 0.0
    %1879 = vmatprep.subr.mxu0 0.0
    %1880 = vmatpush1.msra.mxu0 0.0
    %1881 = vmatprep.subr.mxu0 0.0
    %1882 = vmatpush1.msra.mxu0 0.0
    %1883 = vmatprep.subr.mxu0 0.0
    %1884 = vmatpush1.msra.mxu0 0.0
    %1885 = vmatprep.subr.mxu0 0.0
    %1886 = vmatpush1.msra.mxu0 0.0
    %1887 = vmatprep.subr.mxu0 0.0
    %1888 = vmatpush1.msra.mxu0 0.0
    %1889 = vmatprep.subr.mxu0 0.0
    %1890 = vmatpush1.msra.mxu0 0.0
    %1891 = vmatprep.subr.mxu0 0.0
    %1892 = vmatpush1.msra.mxu0 0.0
    %1893 = vmatprep.subr.mxu0 0.0
    %1894 = vmatpush1.msra.mxu0 0.0
    %1895 = vmatprep.subr.mxu0 0.0
    %1896 = vmatpush1.msra.mxu0 0.0
    %1897 = vmatprep.subr.mxu0 0.0
    %1898 = vmatpush1.msra.mxu0 0.0
    %1899 = vmatprep.subr.mxu0 0.0
    %1900 = vmatpush1.msra.mxu0 0.0
    %1901 = vmatprep.subr.mxu0 0.0
    %1902 = vmatpush1.msra.mxu0 0.0
    %1903 = vmatprep.subr.mxu0 0.0
    %1904 = vmatpush1.msra.mxu0 0.0
    %1905 = vmatprep.subr.mxu0 0.0
    %1906 = vmatpush1.msra.mxu0 0.0
    %1907 = vmatprep.subr.mxu0 0.0
    %1908 = vmatpush1.msra.mxu0 0.0
    %1909 = vmatprep.subr.mxu0 0.0
    %1910 = vmatpush1.msra.mxu0 0.0
    %1911 = vmatprep.subr.mxu0 0.0
    %1912 = vmatpush1.msra.mxu0 0.0
    %1913 = vmatprep.subr.mxu0 0.0
    %1914 = vmatpush1.msra.mxu0 0.0
    %1915 = vmatprep.subr.mxu0 0.0
    %1916 = vmatpush1.msra.mxu0 0.0
    %1917 = vmatprep.mubr.f32.mxu0 0.0
    %v1918 = vand.u32 %v1320, 4294901760
    %1919 = vmatmul.mubr.f32.gmra.mrb[0].mxu0 %v1918
    %v1920 = vpop.f32.mrb[0].mxu0
    %v1921 = vadd.f32 %v1828, %v1920
    %v1922 = vpop.f32.mrb[0].mxu0
    %1923 = vmatprep.mubr.f32.mxu0 0.0
    %v1924 = vand.u32 %v1322, 4294901760
    %1925 = vmatmul.mubr.f32.gmra.mrb[0].mxu0 %v1924
    %v1926 = vpop.f32.mrb[0].mxu0
    %v1927 = vadd.f32 %v1834, %v1926
    %v1928 = vpop.f32.mrb[0].mxu0
    %1929 = vmatprep.mubr.f32.mxu0 0.0
    %v1930 = vand.u32 %v1324, 4294901760
    %1931 = vmatmul.mubr.f32.gmra.mrb[0].mxu0 %v1930
    %v1932 = vpop.f32.mrb[0].mxu0
    %v1933 = vadd.f32 %v1840, %v1932
    %v1934 = vpop.f32.mrb[0].mxu0
    %1935 = vmatprep.mubr.f32.mxu0 0.0
    %v1936 = vand.u32 %v1326, 4294901760
    %1937 = vmatmul.mubr.f32.gmra.mrb[0].mxu0 %v1936
    %v1938 = vpop.f32.mrb[0].mxu0
    %v1939 = vadd.f32 %v1846, %v1938
    %v1940 = vpop.f32.mrb[0].mxu0
    %1941 = vdwg.mxu0
    %v1942 = vand.u32 2147483647, %v1921
    %vm1943 = vcmp.le.f32.partialorder %v1942, 0.7853982
    %vm1944 = vcmp.lt.s32.totalorder %v1921, 0
    %v1945 = vand.u32 %v1921, 2139095040
    %v1946 = vshrl.u32 %v1945, 23
    %v1947 = vsub.s32 %v1946, 127
    %v1948 = vand.u32 2147483647, %v1921
    %v1949 = vand.u32 %v1948, 8388607
    %v1950 = vor.u32 %v1949, 8388608
    %v1951 = vsub.s32 0, %v1950
    %v1952 = vadd.s32 %v1947, 1
    %vm1953 = vcmp.gt.s32.totalorder %v1952, 0
    %v1954 = vsel %vm1953, %v1952, 0
    %v1955 = vshrl.u32 %v1954, 5
    %v1956 = vand.u32 %v1954, 31
    %v1957 = vsub.s32 32, %v1956
    %v1958 = vshrl.u32 683565275, %v1957
    %v1959 = vshll.u32 683565275, %v1956
    %v1960 = vshrl.u32 2475754826, %v1957
    %v1961 = vor.u32 %v1959, %v1960
    %v1962 = vshll.u32 2475754826, %v1956
    %v1963 = vshrl.u32 2131351028, %v1957
    %v1964 = vor.u32 %v1962, %v1963
    %v1965 = vshll.u32 2131351028, %v1956
    %v1966 = vshrl.u32 2102212464, %v1957
    %v1967 = vor.u32 %v1965, %v1966
    %v1968 = vshll.u32 2102212464, %v1956
    %v1969 = vshrl.u32 920167782, %v1957
    %v1970 = vor.u32 %v1968, %v1969
    %v1971 = vshll.u32 920167782, %v1956
    %v1972 = vshrl.u32 1326507024, %v1957
    %v1973 = vor.u32 %v1971, %v1972
    %vm1974 = vcmp.lt.s32.totalorder %v1955, 1
    %vm1975 = vcmp.lt.s32.totalorder %v1955, 2
    %vm1976 = vcmp.lt.s32.totalorder %v1955, 3
    %vm1977 = vcmp.lt.s32.totalorder %v1955, 4
    %v1978 = vsel %vm1974, %v1958, %v1961
    %v1979 = vsel %vm1977, %v1967, 2102212464
    %v1980 = vsel %vm1976, %v1964, %v1979
    %v1981 = vsel %vm1975, %v1978, %v1980
    %v1982 = vsel %vm1974, %v1961, %v1964
    %v1983 = vsel %vm1977, %v1970, 920167782
    %v1984 = vsel %vm1976, %v1967, %v1983
    %v1985 = vsel %vm1975, %v1982, %v1984
    %v1986 = vsel %vm1974, %v1964, %v1967
    %v1987 = vsel %vm1977, %v1973, 1326507024
    %v1988 = vsel %vm1976, %v1970, %v1987
    %v1989 = vsel %vm1975, %v1986, %v1988
    %v1990 = vshll.u32 %v1950, 8
    %v1991 = vmul.u32.u64.compose %v1990, %v1989
    %v1992 = vextract.low.u32 %v1991
    %v1993 = vextract.high.u32 %v1991
    %v1994 = vmul.u32.u64.compose %v1990, %v1985
    %v1995 = vextract.low.u32 %v1994
    %v1996 = vextract.high.u32 %v1994
    %v1997 = vmul.u32 %v1990, %v1981
    %v1998 = vadd.s32 %v1993, %v1995
    %vm1999 = vc.u32 %v1993, %v1995
    %v2000 = vadd.s32 %v1996, 1
    %v2001 = vsel %vm1999, %v2000, %v1996
    %v2002 = vadd.s32 %v1997, %v2001
    %v2003 = vadd.s32 %v2002, 536870912
    %v2004 = vshrl.u32 %v2003, 30
    %v2005 = vshll.u32 %v2004, 30
    %v2006 = vsub.s32 %v2002, %v2005
    %vm2007 = vcmp.lt.s32.totalorder %v2006, 0
    %v2008 = vsub.s32 0, %v2006
    %v2009 = vsel %vm2007, %v2008, %v2006
    %v2010 = vclz %v2009
    %v2011 = vsub.s32 %v2010, 2
    %vm2012 = vcmp.gt.s32.totalorder 0, %v2011
    %v2013 = vsel %vm2012, 0, %v2011
    %v2014 = vsub.s32 32, %v2013
    %v2015 = vshll.u32 %v2006, %v2013
    %v2016 = vshrl.u32 %v1998, %v2014
    %v2017 = vor.u32 %v2015, %v2016
    %v2018 = vsub.s32 4294967266, %v2013
    %v2019 = vadd.s32 %v2018, 127
    %v2020 = vshll.u32 %v2019, 23
    %v2021 = vor.u32 4788187, %v2020
    %v2022 = vand.u32 2147483647, %v2021
    %v2024 = vcvt.s32.f32 %v2017
    %v2025 = vmul.f32 %v2024, %v2022
    %v2026 = vxor.u32 %v2025, 2147483648
    %v2027 = vsel %vm1944, %v2026, %v2025
    %v2028 = vsub.s32 4, %v2004
    %v2029 = vsel %vm1944, %v2028, %v2004
    %v2030 = vsel %vm1943, %v1921, %v2027
    %v2031 = vsel %vm1943, 0, %v2029
    %v2032 = vcosq.f32.pop %v2030
    %v2033 = vsinq.f32.pop %v2030
    %vm2034 = vweird.f32 %v1921
    %v2035 = vadd.s32 %v2031, 3
    %v2036 = vand.u32 %v2035, 3
    %vm2037 = vcmp.lt.s32.totalorder %v2036, 2
    %vm2038 = vcmp.eq.s32.totalorder %v2036, 0
    %v2039 = vxor.u32 %v2033, 2147483648
    %v2040 = vsel %vm2038, %v2032, %v2039
    %vm2041 = vcmp.eq.s32.totalorder %v2036, 2
    %v2042 = vxor.u32 %v2032, 2147483648
    %v2043 = vsel %vm2041, %v2042, %v2033
    %v2044 = vsel %vm2037, %v2040, %v2043
    %v2045 = vsel %vm2034, nan, %v2044
    %v2046 = vand.u32 2147483647, %v1927
    %vm2047 = vcmp.le.f32.partialorder %v2046, 0.7853982
    %vm2048 = vcmp.lt.s32.totalorder %v1927, 0
    %v2049 = vand.u32 %v1927, 2139095040
    %v2050 = vshrl.u32 %v2049, 23
    %v2051 = vsub.s32 %v2050, 127
    %v2052 = vand.u32 2147483647, %v1927
    %v2053 = vand.u32 %v2052, 8388607
    %v2054 = vor.u32 %v2053, 8388608
    %v2055 = vsub.s32 0, %v2054
    %v2056 = vadd.s32 %v2051, 1
    %vm2057 = vcmp.gt.s32.totalorder %v2056, 0
    %v2058 = vsel %vm2057, %v2056, 0
    %v2059 = vshrl.u32 %v2058, 5
    %v2060 = vand.u32 %v2058, 31
    %v2061 = vsub.s32 32, %v2060
    %v2062 = vshrl.u32 683565275, %v2061
    %v2063 = vshll.u32 683565275, %v2060
    %v2064 = vshrl.u32 2475754826, %v2061
    %v2065 = vor.u32 %v2063, %v2064
    %v2066 = vshll.u32 2475754826, %v2060
    %v2067 = vshrl.u32 2131351028, %v2061
    %v2068 = vor.u32 %v2066, %v2067
    %v2069 = vshll.u32 2131351028, %v2060
    %v2070 = vshrl.u32 2102212464, %v2061
    %v2071 = vor.u32 %v2069, %v2070
    %v2072 = vshll.u32 2102212464, %v2060
    %v2073 = vshrl.u32 920167782, %v2061
    %v2074 = vor.u32 %v2072, %v2073
    %v2075 = vshll.u32 920167782, %v2060
    %v2076 = vshrl.u32 1326507024, %v2061
    %v2077 = vor.u32 %v2075, %v2076
    %vm2078 = vcmp.lt.s32.totalorder %v2059, 1
    %vm2079 = vcmp.lt.s32.totalorder %v2059, 2
    %vm2080 = vcmp.lt.s32.totalorder %v2059, 3
    %vm2081 = vcmp.lt.s32.totalorder %v2059, 4
    %v2082 = vsel %vm2078, %v2062, %v2065
    %v2083 = vsel %vm2081, %v2071, 2102212464
    %v2084 = vsel %vm2080, %v2068, %v2083
    %v2085 = vsel %vm2079, %v2082, %v2084
    %v2086 = vsel %vm2078, %v2065, %v2068
    %v2087 = vsel %vm2081, %v2074, 920167782
    %v2088 = vsel %vm2080, %v2071, %v2087
    %v2089 = vsel %vm2079, %v2086, %v2088
    %v2090 = vsel %vm2078, %v2068, %v2071
    %v2091 = vsel %vm2081, %v2077, 1326507024
    %v2092 = vsel %vm2080, %v2074, %v2091
    %v2093 = vsel %vm2079, %v2090, %v2092
    %v2094 = vshll.u32 %v2054, 8
    %v2095 = vmul.u32.u64.compose %v2094, %v2093
    %v2096 = vextract.low.u32 %v2095
    %v2097 = vextract.high.u32 %v2095
    %v2098 = vmul.u32.u64.compose %v2094, %v2089
    %v2099 = vextract.low.u32 %v2098
    %v2100 = vextract.high.u32 %v2098
    %v2101 = vmul.u32 %v2094, %v2085
    %v2102 = vadd.s32 %v2097, %v2099
    %vm2103 = vc.u32 %v2097, %v2099
    %v2104 = vadd.s32 %v2100, 1
    %v2105 = vsel %vm2103, %v2104, %v2100
    %v2106 = vadd.s32 %v2101, %v2105
    %v2107 = vadd.s32 %v2106, 536870912
    %v2108 = vshrl.u32 %v2107, 30
    %v2109 = vshll.u32 %v2108, 30
    %v2110 = vsub.s32 %v2106, %v2109
    %vm2111 = vcmp.lt.s32.totalorder %v2110, 0
    %v2112 = vsub.s32 0, %v2110
    %v2113 = vsel %vm2111, %v2112, %v2110
    %v2114 = vclz %v2113
    %v2115 = vsub.s32 %v2114, 2
    %vm2116 = vcmp.gt.s32.totalorder 0, %v2115
    %v2117 = vsel %vm2116, 0, %v2115
    %v2118 = vsub.s32 32, %v2117
    %v2119 = vshll.u32 %v2110, %v2117
    %v2120 = vshrl.u32 %v2102, %v2118
    %v2121 = vor.u32 %v2119, %v2120
    %v2122 = vsub.s32 4294967266, %v2117
    %v2123 = vadd.s32 %v2122, 127
    %v2124 = vshll.u32 %v2123, 23
    %v2125 = vor.u32 4788187, %v2124
    %v2126 = vand.u32 2147483647, %v2125
    %v2128 = vcvt.s32.f32 %v2121
    %v2129 = vmul.f32 %v2128, %v2126
    %v2130 = vxor.u32 %v2129, 2147483648
    %v2131 = vsel %vm2048, %v2130, %v2129
    %v2132 = vsub.s32 4, %v2108
    %v2133 = vsel %vm2048, %v2132, %v2108
    %v2134 = vsel %vm2047, %v1927, %v2131
    %v2135 = vsel %vm2047, 0, %v2133
    %v2136 = vcosq.f32.pop %v2134
    %v2137 = vsinq.f32.pop %v2134
    %vm2138 = vweird.f32 %v1927
    %v2139 = vadd.s32 %v2135, 3
    %v2140 = vand.u32 %v2139, 3
    %vm2141 = vcmp.lt.s32.totalorder %v2140, 2
    %vm2142 = vcmp.eq.s32.totalorder %v2140, 0
    %v2143 = vxor.u32 %v2137, 2147483648
    %v2144 = vsel %vm2142, %v2136, %v2143
    %vm2145 = vcmp.eq.s32.totalorder %v2140, 2
    %v2146 = vxor.u32 %v2136, 2147483648
    %v2147 = vsel %vm2145, %v2146, %v2137
    %v2148 = vsel %vm2141, %v2144, %v2147
    %v2149 = vsel %vm2138, nan, %v2148
    %v2150 = vand.u32 2147483647, %v1933
    %vm2151 = vcmp.le.f32.partialorder %v2150, 0.7853982
    %vm2152 = vcmp.lt.s32.totalorder %v1933, 0
    %v2153 = vand.u32 %v1933, 2139095040
    %v2154 = vshrl.u32 %v2153, 23
    %v2155 = vsub.s32 %v2154, 127
    %v2156 = vand.u32 2147483647, %v1933
    %v2157 = vand.u32 %v2156, 8388607
    %v2158 = vor.u32 %v2157, 8388608
    %v2159 = vsub.s32 0, %v2158
    %v2160 = vadd.s32 %v2155, 1
    %vm2161 = vcmp.gt.s32.totalorder %v2160, 0
    %v2162 = vsel %vm2161, %v2160, 0
    %v2163 = vshrl.u32 %v2162, 5
    %v2164 = vand.u32 %v2162, 31
    %v2165 = vsub.s32 32, %v2164
    %v2166 = vshrl.u32 683565275, %v2165
    %v2167 = vshll.u32 683565275, %v2164
    %v2168 = vshrl.u32 2475754826, %v2165
    %v2169 = vor.u32 %v2167, %v2168
    %v2170 = vshll.u32 2475754826, %v2164
    %v2171 = vshrl.u32 2131351028, %v2165
    %v2172 = vor.u32 %v2170, %v2171
    %v2173 = vshll.u32 2131351028, %v2164
    %v2174 = vshrl.u32 2102212464, %v2165
    %v2175 = vor.u32 %v2173, %v2174
    %v2176 = vshll.u32 2102212464, %v2164
    %v2177 = vshrl.u32 920167782, %v2165
    %v2178 = vor.u32 %v2176, %v2177
    %v2179 = vshll.u32 920167782, %v2164
    %v2180 = vshrl.u32 1326507024, %v2165
    %v2181 = vor.u32 %v2179, %v2180
    %vm2182 = vcmp.lt.s32.totalorder %v2163, 1
    %vm2183 = vcmp.lt.s32.totalorder %v2163, 2
    %vm2184 = vcmp.lt.s32.totalorder %v2163, 3
    %vm2185 = vcmp.lt.s32.totalorder %v2163, 4
    %v2186 = vsel %vm2182, %v2166, %v2169
    %v2187 = vsel %vm2185, %v2175, 2102212464
    %v2188 = vsel %vm2184, %v2172, %v2187
    %v2189 = vsel %vm2183, %v2186, %v2188
    %v2190 = vsel %vm2182, %v2169, %v2172
    %v2191 = vsel %vm2185, %v2178, 920167782
    %v2192 = vsel %vm2184, %v2175, %v2191
    %v2193 = vsel %vm2183, %v2190, %v2192
    %v2194 = vsel %vm2182, %v2172, %v2175
    %v2195 = vsel %vm2185, %v2181, 1326507024
    %v2196 = vsel %vm2184, %v2178, %v2195
    %v2197 = vsel %vm2183, %v2194, %v2196
    %v2198 = vshll.u32 %v2158, 8
    %v2199 = vmul.u32.u64.compose %v2198, %v2197
    %v2200 = vextract.low.u32 %v2199
    %v2201 = vextract.high.u32 %v2199
    %v2202 = vmul.u32.u64.compose %v2198, %v2193
    %v2203 = vextract.low.u32 %v2202
    %v2204 = vextract.high.u32 %v2202
    %v2205 = vmul.u32 %v2198, %v2189
    %v2206 = vadd.s32 %v2201, %v2203
    %vm2207 = vc.u32 %v2201, %v2203
    %v2208 = vadd.s32 %v2204, 1
    %v2209 = vsel %vm2207, %v2208, %v2204
    %v2210 = vadd.s32 %v2205, %v2209
    %v2211 = vadd.s32 %v2210, 536870912
    %v2212 = vshrl.u32 %v2211, 30
    %v2213 = vshll.u32 %v2212, 30
    %v2214 = vsub.s32 %v2210, %v2213
    %vm2215 = vcmp.lt.s32.totalorder %v2214, 0
    %v2216 = vsub.s32 0, %v2214
    %v2217 = vsel %vm2215, %v2216, %v2214
    %v2218 = vclz %v2217
    %v2219 = vsub.s32 %v2218, 2
    %vm2220 = vcmp.gt.s32.totalorder 0, %v2219
    %v2221 = vsel %vm2220, 0, %v2219
    %v2222 = vsub.s32 32, %v2221
    %v2223 = vshll.u32 %v2214, %v2221
    %v2224 = vshrl.u32 %v2206, %v2222
    %v2225 = vor.u32 %v2223, %v2224
    %v2226 = vsub.s32 4294967266, %v2221
    %v2227 = vadd.s32 %v2226, 127
    %v2228 = vshll.u32 %v2227, 23
    %v2229 = vor.u32 4788187, %v2228
    %v2230 = vand.u32 2147483647, %v2229
    %v2232 = vcvt.s32.f32 %v2225
    %v2233 = vmul.f32 %v2232, %v2230
    %v2234 = vxor.u32 %v2233, 2147483648
    %v2235 = vsel %vm2152, %v2234, %v2233
    %v2236 = vsub.s32 4, %v2212
    %v2237 = vsel %vm2152, %v2236, %v2212
    %v2238 = vsel %vm2151, %v1933, %v2235
    %v2239 = vsel %vm2151, 0, %v2237
    %v2240 = vcosq.f32.pop %v2238
    %v2241 = vsinq.f32.pop %v2238
    %vm2242 = vweird.f32 %v1933
    %v2243 = vadd.s32 %v2239, 3
    %v2244 = vand.u32 %v2243, 3
    %vm2245 = vcmp.lt.s32.totalorder %v2244, 2
    %vm2246 = vcmp.eq.s32.totalorder %v2244, 0
    %v2247 = vxor.u32 %v2241, 2147483648
    %v2248 = vsel %vm2246, %v2240, %v2247
    %vm2249 = vcmp.eq.s32.totalorder %v2244, 2
    %v2250 = vxor.u32 %v2240, 2147483648
    %v2251 = vsel %vm2249, %v2250, %v2241
    %v2252 = vsel %vm2245, %v2248, %v2251
    %v2253 = vsel %vm2242, nan, %v2252
    %v2254 = vand.u32 2147483647, %v1939
    %vm2255 = vcmp.le.f32.partialorder %v2254, 0.7853982
    %vm2256 = vcmp.lt.s32.totalorder %v1939, 0
    %v2257 = vand.u32 %v1939, 2139095040
    %v2258 = vshrl.u32 %v2257, 23
    %v2259 = vsub.s32 %v2258, 127
    %v2260 = vand.u32 2147483647, %v1939
    %v2261 = vand.u32 %v2260, 8388607
    %v2262 = vor.u32 %v2261, 8388608
    %v2263 = vsub.s32 0, %v2262
    %v2264 = vadd.s32 %v2259, 1
    %vm2265 = vcmp.gt.s32.totalorder %v2264, 0
    %v2266 = vsel %vm2265, %v2264, 0
    %v2267 = vshrl.u32 %v2266, 5
    %v2268 = vand.u32 %v2266, 31
    %v2269 = vsub.s32 32, %v2268
    %v2270 = vshrl.u32 683565275, %v2269
    %v2271 = vshll.u32 683565275, %v2268
    %v2272 = vshrl.u32 2475754826, %v2269
    %v2273 = vor.u32 %v2271, %v2272
    %v2274 = vshll.u32 2475754826, %v2268
    %v2275 = vshrl.u32 2131351028, %v2269
    %v2276 = vor.u32 %v2274, %v2275
    %v2277 = vshll.u32 2131351028, %v2268
    %v2278 = vshrl.u32 2102212464, %v2269
    %v2279 = vor.u32 %v2277, %v2278
    %v2280 = vshll.u32 2102212464, %v2268
    %v2281 = vshrl.u32 920167782, %v2269
    %v2282 = vor.u32 %v2280, %v2281
    %v2283 = vshll.u32 920167782, %v2268
    %v2284 = vshrl.u32 1326507024, %v2269
    %v2285 = vor.u32 %v2283, %v2284
    %vm2286 = vcmp.lt.s32.totalorder %v2267, 1
    %vm2287 = vcmp.lt.s32.totalorder %v2267, 2
    %vm2288 = vcmp.lt.s32.totalorder %v2267, 3
    %vm2289 = vcmp.lt.s32.totalorder %v2267, 4
    %v2290 = vsel %vm2286, %v2270, %v2273
    %v2291 = vsel %vm2289, %v2279, 2102212464
    %v2292 = vsel %vm2288, %v2276, %v2291
    %v2293 = vsel %vm2287, %v2290, %v2292
    %v2294 = vsel %vm2286, %v2273, %v2276
    %v2295 = vsel %vm2289, %v2282, 920167782
    %v2296 = vsel %vm2288, %v2279, %v2295
    %v2297 = vsel %vm2287, %v2294, %v2296
    %v2298 = vsel %vm2286, %v2276, %v2279
    %v2299 = vsel %vm2289, %v2285, 1326507024
    %v2300 = vsel %vm2288, %v2282, %v2299
    %v2301 = vsel %vm2287, %v2298, %v2300
    %v2302 = vshll.u32 %v2262, 8
    %v2303 = vmul.u32.u64.compose %v2302, %v2301
    %v2304 = vextract.low.u32 %v2303
    %v2305 = vextract.high.u32 %v2303
    %v2306 = vmul.u32.u64.compose %v2302, %v2297
    %v2307 = vextract.low.u32 %v2306
    %v2308 = vextract.high.u32 %v2306
    %v2309 = vmul.u32 %v2302, %v2293
    %v2310 = vadd.s32 %v2305, %v2307
    %vm2311 = vc.u32 %v2305, %v2307
    %v2312 = vadd.s32 %v2308, 1
    %v2313 = vsel %vm2311, %v2312, %v2308
    %v2314 = vadd.s32 %v2309, %v2313
    %v2315 = vadd.s32 %v2314, 536870912
    %v2316 = vshrl.u32 %v2315, 30
    %v2317 = vshll.u32 %v2316, 30
    %v2318 = vsub.s32 %v2314, %v2317
    %vm2319 = vcmp.lt.s32.totalorder %v2318, 0
    %v2320 = vsub.s32 0, %v2318
    %v2321 = vsel %vm2319, %v2320, %v2318
    %v2322 = vclz %v2321
    %v2323 = vsub.s32 %v2322, 2
    %vm2324 = vcmp.gt.s32.totalorder 0, %v2323
    %v2325 = vsel %vm2324, 0, %v2323
    %v2326 = vsub.s32 32, %v2325
    %v2327 = vshll.u32 %v2318, %v2325
    %v2328 = vshrl.u32 %v2310, %v2326
    %v2329 = vor.u32 %v2327, %v2328
    %v2330 = vsub.s32 4294967266, %v2325
    %v2331 = vadd.s32 %v2330, 127
    %v2332 = vshll.u32 %v2331, 23
    %v2333 = vor.u32 4788187, %v2332
    %v2334 = vand.u32 2147483647, %v2333
    %v2336 = vcvt.s32.f32 %v2329
    %v2337 = vmul.f32 %v2336, %v2334
    %v2338 = vxor.u32 %v2337, 2147483648
    %v2339 = vsel %vm2256, %v2338, %v2337
    %v2340 = vsub.s32 4, %v2316
    %v2341 = vsel %vm2256, %v2340, %v2316
    %v2342 = vsel %vm2255, %v1939, %v2339
    %v2343 = vsel %vm2255, 0, %v2341
    %v2344 = vcosq.f32.pop %v2342
    %v2345 = vsinq.f32.pop %v2342
    %vm2346 = vweird.f32 %v1939
    %v2347 = vadd.s32 %v2343, 3
    %v2348 = vand.u32 %v2347, 3
    %vm2349 = vcmp.lt.s32.totalorder %v2348, 2
    %vm2350 = vcmp.eq.s32.totalorder %v2348, 0
    %v2351 = vxor.u32 %v2345, 2147483648
    %v2352 = vsel %vm2350, %v2344, %v2351
    %vm2353 = vcmp.eq.s32.totalorder %v2348, 2
    %v2354 = vxor.u32 %v2344, 2147483648
    %v2355 = vsel %vm2353, %v2354, %v2345
    %v2356 = vsel %vm2349, %v2352, %v2355
    %v2357 = vsel %vm2346, nan, %v2356
    %v2358 = vld [vmem:[%s1 + $0x40] sm:$0x1]
    %2360 = vset.pattern.permute.xlu0 32
    %2361 = vperm.xlu0 %2360, %v2358
    %v2362 = vpop.permute.xlu0 %2361
    %v2364 = vsel %vm1319, %v2358, 0
    %2366 = vmatprep.subr.mxu0 0.0
    %v2367 = vand.u32 %v2045, 4294901760
    %2368 = vmatpush1.msra.mxu0 %v2367
    %2369 = vmatprep.subr.mxu0 0.0
    %v2370 = vand.u32 %v2149, 4294901760
    %2371 = vmatpush1.msra.mxu0 %v2370
    %2372 = vmatprep.subr.mxu0 0.0
    %v2373 = vand.u32 %v2253, 4294901760
    %2374 = vmatpush1.msra.mxu0 %v2373
    %2375 = vmatprep.subr.mxu0 0.0
    %v2376 = vand.u32 %v2357, 4294901760
    %2377 = vmatpush1.msra.mxu0 %v2376
    %2378 = vmatprep.subr.mxu0 0.0
    %2379 = vmatpush1.msra.mxu0 0.0
    %2380 = vmatprep.subr.mxu0 0.0
    %2381 = vmatpush1.msra.mxu0 0.0
    %2382 = vmatprep.subr.mxu0 0.0
    %2383 = vmatpush1.msra.mxu0 0.0
    %2384 = vmatprep.subr.mxu0 0.0
    %2385 = vmatpush1.msra.mxu0 0.0
    %2386 = vmatprep.subr.mxu0 0.0
    %2387 = vmatpush1.msra.mxu0 0.0
    %2388 = vmatprep.subr.mxu0 0.0
    %2389 = vmatpush1.msra.mxu0 0.0
    %2390 = vmatprep.subr.mxu0 0.0
    %2391 = vmatpush1.msra.mxu0 0.0
    %2392 = vmatprep.subr.mxu0 0.0
    %2393 = vmatpush1.msra.mxu0 0.0
    %2394 = vmatprep.subr.mxu0 0.0
    %2395 = vmatpush1.msra.mxu0 0.0
    %2396 = vmatprep.subr.mxu0 0.0
    %2397 = vmatpush1.msra.mxu0 0.0
    %2398 = vmatprep.subr.mxu0 0.0
    %2399 = vmatpush1.msra.mxu0 0.0
    %2400 = vmatprep.subr.mxu0 0.0
    %2401 = vmatpush1.msra.mxu0 0.0
    %2402 = vmatprep.subr.mxu0 0.0
    %2403 = vmatpush1.msra.mxu0 0.0
    %2404 = vmatprep.subr.mxu0 0.0
    %2405 = vmatpush1.msra.mxu0 0.0
    %2406 = vmatprep.subr.mxu0 0.0
    %2407 = vmatpush1.msra.mxu0 0.0
    %2408 = vmatprep.subr.mxu0 0.0
    %2409 = vmatpush1.msra.mxu0 0.0
    %2410 = vmatprep.subr.mxu0 0.0
    %2411 = vmatpush1.msra.mxu0 0.0
    %2412 = vmatprep.subr.mxu0 0.0
    %2413 = vmatpush1.msra.mxu0 0.0
    %2414 = vmatprep.subr.mxu0 0.0
    %2415 = vmatpush1.msra.mxu0 0.0
    %2416 = vmatprep.subr.mxu0 0.0
    %2417 = vmatpush1.msra.mxu0 0.0
    %2418 = vmatprep.subr.mxu0 0.0
    %2419 = vmatpush1.msra.mxu0 0.0
    %2420 = vmatprep.subr.mxu0 0.0
    %2421 = vmatpush1.msra.mxu0 0.0
    %2422 = vmatprep.subr.mxu0 0.0
    %2423 = vmatpush1.msra.mxu0 0.0
    %2424 = vmatprep.subr.mxu0 0.0
    %2425 = vmatpush1.msra.mxu0 0.0
    %2426 = vmatprep.subr.mxu0 0.0
    %2427 = vmatpush1.msra.mxu0 0.0
    %2428 = vmatprep.subr.mxu0 0.0
    %2429 = vmatpush1.msra.mxu0 0.0
    %2430 = vmatprep.subr.mxu0 0.0
    %2431 = vmatpush1.msra.mxu0 0.0
    %2432 = vmatprep.subr.mxu0 0.0
    %2433 = vmatpush1.msra.mxu0 0.0
    %2434 = vmatprep.mubr.f32.mxu0 0.0
    %v2435 = vand.u32 %v2364, 4294901760
    %v2436 = vsub.f32 %v2364, %v2435
    %v2437 = vand.u32 %v2436, 4294901760
    %v2438 = vsub.f32 %v2436, %v2437
    %v2439 = vand.u32 %v2438, 4294901760
    %2440 = vmatmul.mubr.f32.gmra.mrb[0].mxu0 %v2439
    %v2441 = vpop.f32.mrb[0].mxu0
    %v2442 = vadd.f32 %v2362, %v2441
    %v2443 = vpop.f32.mrb[0].mxu0
    %2444 = vdwg.mxu0
    %2445 = vmatprep.subr.mxu0 0.0
    %v2446 = vand.u32 %v2045, 4294901760
    %v2447 = vsub.f32 %v2045, %v2446
    %v2448 = vand.u32 %v2447, 4294901760
    %v2449 = vsub.f32 %v2447, %v2448
    %v2450 = vand.u32 %v2449, 4294901760
    %2451 = vmatpush1.msra.mxu0 %v2450
    %2452 = vmatprep.subr.mxu0 0.0
    %v2453 = vand.u32 %v2149, 4294901760
    %v2454 = vsub.f32 %v2149, %v2453
    %v2455 = vand.u32 %v2454, 4294901760
    %v2456 = vsub.f32 %v2454, %v2455
    %v2457 = vand.u32 %v2456, 4294901760
    %2458 = vmatpush1.msra.mxu0 %v2457
    %2459 = vmatprep.subr.mxu0 0.0
    %v2460 = vand.u32 %v2253, 4294901760
    %v2461 = vsub.f32 %v2253, %v2460
    %v2462 = vand.u32 %v2461, 4294901760
    %v2463 = vsub.f32 %v2461, %v2462
    %v2464 = vand.u32 %v2463, 4294901760
    %2465 = vmatpush1.msra.mxu0 %v2464
    %2466 = vmatprep.subr.mxu0 0.0
    %v2467 = vand.u32 %v2357, 4294901760
    %v2468 = vsub.f32 %v2357, %v2467
    %v2469 = vand.u32 %v2468, 4294901760
    %v2470 = vsub.f32 %v2468, %v2469
    %v2471 = vand.u32 %v2470, 4294901760
    %2472 = vmatpush1.msra.mxu0 %v2471
    %2473 = vmatprep.subr.mxu0 0.0
    %2474 = vmatpush1.msra.mxu0 0.0
    %2475 = vmatprep.subr.mxu0 0.0
    %2476 = vmatpush1.msra.mxu0 0.0
    %2477 = vmatprep.subr.mxu0 0.0
    %2478 = vmatpush1.msra.mxu0 0.0
    %2479 = vmatprep.subr.mxu0 0.0
    %2480 = vmatpush1.msra.mxu0 0.0
    %2481 = vmatprep.subr.mxu0 0.0
    %2482 = vmatpush1.msra.mxu0 0.0
    %2483 = vmatprep.subr.mxu0 0.0
    %2484 = vmatpush1.msra.mxu0 0.0
    %2485 = vmatprep.subr.mxu0 0.0
    %2486 = vmatpush1.msra.mxu0 0.0
    %2487 = vmatprep.subr.mxu0 0.0
    %2488 = vmatpush1.msra.mxu0 0.0
    %2489 = vmatprep.subr.mxu0 0.0
    %2490 = vmatpush1.msra.mxu0 0.0
    %2491 = vmatprep.subr.mxu0 0.0
    %2492 = vmatpush1.msra.mxu0 0.0
    %2493 = vmatprep.subr.mxu0 0.0
    %2494 = vmatpush1.msra.mxu0 0.0
    %2495 = vmatprep.subr.mxu0 0.0
    %2496 = vmatpush1.msra.mxu0 0.0
    %2497 = vmatprep.subr.mxu0 0.0
    %2498 = vmatpush1.msra.mxu0 0.0
    %2499 = vmatprep.subr.mxu0 0.0
    %2500 = vmatpush1.msra.mxu0 0.0
    %2501 = vmatprep.subr.mxu0 0.0
    %2502 = vmatpush1.msra.mxu0 0.0
    %2503 = vmatprep.subr.mxu0 0.0
    %2504 = vmatpush1.msra.mxu0 0.0
    %2505 = vmatprep.subr.mxu0 0.0
    %2506 = vmatpush1.msra.mxu0 0.0
    %2507 = vmatprep.subr.mxu0 0.0
    %2508 = vmatpush1.msra.mxu0 0.0
    %2509 = vmatprep.subr.mxu0 0.0
    %2510 = vmatpush1.msra.mxu0 0.0
    %2511 = vmatprep.subr.mxu0 0.0
    %2512 = vmatpush1.msra.mxu0 0.0
    %2513 = vmatprep.subr.mxu0 0.0
    %2514 = vmatpush1.msra.mxu0 0.0
    %2515 = vmatprep.subr.mxu0 0.0
    %2516 = vmatpush1.msra.mxu0 0.0
    %2517 = vmatprep.subr.mxu0 0.0
    %2518 = vmatpush1.msra.mxu0 0.0
    %2519 = vmatprep.subr.mxu0 0.0
    %2520 = vmatpush1.msra.mxu0 0.0
    %2521 = vmatprep.subr.mxu0 0.0
    %2522 = vmatpush1.msra.mxu0 0.0
    %2523 = vmatprep.subr.mxu0 0.0
    %2524 = vmatpush1.msra.mxu0 0.0
    %2525 = vmatprep.subr.mxu0 0.0
    %2526 = vmatpush1.msra.mxu0 0.0
    %2527 = vmatprep.subr.mxu0 0.0
    %2528 = vmatpush1.msra.mxu0 0.0
    %2529 = vmatprep.mubr.f32.mxu0 0.0
    %v2530 = vand.u32 %v2364, 4294901760
    %2531 = vmatmul.mubr.f32.gmra.mrb[0].mxu0 %v2530
    %v2532 = vpop.f32.mrb[0].mxu0
    %v2533 = vadd.f32 %v2442, %v2532
    %v2534 = vpop.f32.mrb[0].mxu0
    %2535 = vdwg.mxu0
    %2536 = vmatprep.subr.mxu0 0.0
    %v2537 = vand.u32 %v2045, 4294901760
    %v2538 = vsub.f32 %v2045, %v2537
    %2539 = vmatpush1.msra.mxu0 %v2538
    %2540 = vmatprep.subr.mxu0 0.0
    %v2541 = vand.u32 %v2149, 4294901760
    %v2542 = vsub.f32 %v2149, %v2541
    %2543 = vmatpush1.msra.mxu0 %v2542
    %2544 = vmatprep.subr.mxu0 0.0
    %v2545 = vand.u32 %v2253, 4294901760
    %v2546 = vsub.f32 %v2253, %v2545
    %2547 = vmatpush1.msra.mxu0 %v2546
    %2548 = vmatprep.subr.mxu0 0.0
    %v2549 = vand.u32 %v2357, 4294901760
    %v2550 = vsub.f32 %v2357, %v2549
    %2551 = vmatpush1.msra.mxu0 %v2550
    %2552 = vmatprep.subr.mxu0 0.0
    %2553 = vmatpush1.msra.mxu0 0.0
    %2554 = vmatprep.subr.mxu0 0.0
    %2555 = vmatpush1.msra.mxu0 0.0
    %2556 = vmatprep.subr.mxu0 0.0
    %2557 = vmatpush1.msra.mxu0 0.0
    %2558 = vmatprep.subr.mxu0 0.0
    %2559 = vmatpush1.msra.mxu0 0.0
    %2560 = vmatprep.subr.mxu0 0.0
    %2561 = vmatpush1.msra.mxu0 0.0
    %2562 = vmatprep.subr.mxu0 0.0
    %2563 = vmatpush1.msra.mxu0 0.0
    %2564 = vmatprep.subr.mxu0 0.0
    %2565 = vmatpush1.msra.mxu0 0.0
    %2566 = vmatprep.subr.mxu0 0.0
    %2567 = vmatpush1.msra.mxu0 0.0
    %2568 = vmatprep.subr.mxu0 0.0
    %2569 = vmatpush1.msra.mxu0 0.0
    %2570 = vmatprep.subr.mxu0 0.0
    %2571 = vmatpush1.msra.mxu0 0.0
    %2572 = vmatprep.subr.mxu0 0.0
    %2573 = vmatpush1.msra.mxu0 0.0
    %2574 = vmatprep.subr.mxu0 0.0
    %2575 = vmatpush1.msra.mxu0 0.0
    %2576 = vmatprep.subr.mxu0 0.0
    %2577 = vmatpush1.msra.mxu0 0.0
    %2578 = vmatprep.subr.mxu0 0.0
    %2579 = vmatpush1.msra.mxu0 0.0
    %2580 = vmatprep.subr.mxu0 0.0
    %2581 = vmatpush1.msra.mxu0 0.0
    %2582 = vmatprep.subr.mxu0 0.0
    %2583 = vmatpush1.msra.mxu0 0.0
    %2584 = vmatprep.subr.mxu0 0.0
    %2585 = vmatpush1.msra.mxu0 0.0
    %2586 = vmatprep.subr.mxu0 0.0
    %2587 = vmatpush1.msra.mxu0 0.0
    %2588 = vmatprep.subr.mxu0 0.0
    %2589 = vmatpush1.msra.mxu0 0.0
    %2590 = vmatprep.subr.mxu0 0.0
    %2591 = vmatpush1.msra.mxu0 0.0
    %2592 = vmatprep.subr.mxu0 0.0
    %2593 = vmatpush1.msra.mxu0 0.0
    %2594 = vmatprep.subr.mxu0 0.0
    %2595 = vmatpush1.msra.mxu0 0.0
    %2596 = vmatprep.subr.mxu0 0.0
    %2597 = vmatpush1.msra.mxu0 0.0
    %2598 = vmatprep.subr.mxu0 0.0
    %2599 = vmatpush1.msra.mxu0 0.0
    %2600 = vmatprep.subr.mxu0 0.0
    %2601 = vmatpush1.msra.mxu0 0.0
    %2602 = vmatprep.subr.mxu0 0.0
    %2603 = vmatpush1.msra.mxu0 0.0
    %2604 = vmatprep.subr.mxu0 0.0
    %2605 = vmatpush1.msra.mxu0 0.0
    %2606 = vmatprep.subr.mxu0 0.0
    %2607 = vmatpush1.msra.mxu0 0.0
    %2608 = vmatprep.mubr.f32.mxu0 0.0
    %v2609 = vand.u32 %v2364, 4294901760
    %v2610 = vsub.f32 %v2364, %v2609
    %2611 = vmatmul.mubr.f32.gmra.mrb[0].mxu0 %v2610
    %v2612 = vpop.f32.mrb[0].mxu0
    %v2613 = vadd.f32 %v2533, %v2612
    %v2614 = vpop.f32.mrb[0].mxu0
    %2615 = vdwg.mxu0
    %2616 = vmatprep.subr.mxu0 0.0
    %v2617 = vand.u32 %v2045, 4294901760
    %2618 = vmatpush1.msra.mxu0 %v2617
    %2619 = vmatprep.subr.mxu0 0.0
    %v2620 = vand.u32 %v2149, 4294901760
    %2621 = vmatpush1.msra.mxu0 %v2620
    %2622 = vmatprep.subr.mxu0 0.0
    %v2623 = vand.u32 %v2253, 4294901760
    %2624 = vmatpush1.msra.mxu0 %v2623
    %2625 = vmatprep.subr.mxu0 0.0
    %v2626 = vand.u32 %v2357, 4294901760
    %2627 = vmatpush1.msra.mxu0 %v2626
    %2628 = vmatprep.subr.mxu0 0.0
    %2629 = vmatpush1.msra.mxu0 0.0
    %2630 = vmatprep.subr.mxu0 0.0
    %2631 = vmatpush1.msra.mxu0 0.0
    %2632 = vmatprep.subr.mxu0 0.0
    %2633 = vmatpush1.msra.mxu0 0.0
    %2634 = vmatprep.subr.mxu0 0.0
    %2635 = vmatpush1.msra.mxu0 0.0
    %2636 = vmatprep.subr.mxu0 0.0
    %2637 = vmatpush1.msra.mxu0 0.0
    %2638 = vmatprep.subr.mxu0 0.0
    %2639 = vmatpush1.msra.mxu0 0.0
    %2640 = vmatprep.subr.mxu0 0.0
    %2641 = vmatpush1.msra.mxu0 0.0
    %2642 = vmatprep.subr.mxu0 0.0
    %2643 = vmatpush1.msra.mxu0 0.0
    %2644 = vmatprep.subr.mxu0 0.0
    %2645 = vmatpush1.msra.mxu0 0.0
    %2646 = vmatprep.subr.mxu0 0.0
    %2647 = vmatpush1.msra.mxu0 0.0
    %2648 = vmatprep.subr.mxu0 0.0
    %2649 = vmatpush1.msra.mxu0 0.0
    %2650 = vmatprep.subr.mxu0 0.0
    %2651 = vmatpush1.msra.mxu0 0.0
    %2652 = vmatprep.subr.mxu0 0.0
    %2653 = vmatpush1.msra.mxu0 0.0
    %2654 = vmatprep.subr.mxu0 0.0
    %2655 = vmatpush1.msra.mxu0 0.0
    %2656 = vmatprep.subr.mxu0 0.0
    %2657 = vmatpush1.msra.mxu0 0.0
    %2658 = vmatprep.subr.mxu0 0.0
    %2659 = vmatpush1.msra.mxu0 0.0
    %2660 = vmatprep.subr.mxu0 0.0
    %2661 = vmatpush1.msra.mxu0 0.0
    %2662 = vmatprep.subr.mxu0 0.0
    %2663 = vmatpush1.msra.mxu0 0.0
    %2664 = vmatprep.subr.mxu0 0.0
    %2665 = vmatpush1.msra.mxu0 0.0
    %2666 = vmatprep.subr.mxu0 0.0
    %2667 = vmatpush1.msra.mxu0 0.0
    %2668 = vmatprep.subr.mxu0 0.0
    %2669 = vmatpush1.msra.mxu0 0.0
    %2670 = vmatprep.subr.mxu0 0.0
    %2671 = vmatpush1.msra.mxu0 0.0
    %2672 = vmatprep.subr.mxu0 0.0
    %2673 = vmatpush1.msra.mxu0 0.0
    %2674 = vmatprep.subr.mxu0 0.0
    %2675 = vmatpush1.msra.mxu0 0.0
    %2676 = vmatprep.subr.mxu0 0.0
    %2677 = vmatpush1.msra.mxu0 0.0
    %2678 = vmatprep.subr.mxu0 0.0
    %2679 = vmatpush1.msra.mxu0 0.0
    %2680 = vmatprep.subr.mxu0 0.0
    %2681 = vmatpush1.msra.mxu0 0.0
    %2682 = vmatprep.subr.mxu0 0.0
    %2683 = vmatpush1.msra.mxu0 0.0
    %2684 = vmatprep.mubr.f32.mxu0 0.0
    %v2685 = vand.u32 %v2364, 4294901760
    %v2686 = vsub.f32 %v2364, %v2685
    %v2687 = vand.u32 %v2686, 4294901760
    %2688 = vmatmul.mubr.f32.gmra.mrb[0].mxu0 %v2687
    %v2689 = vpop.f32.mrb[0].mxu0
    %v2690 = vadd.f32 %v2613, %v2689
    %v2691 = vpop.f32.mrb[0].mxu0
    %2692 = vdwg.mxu0
    %2693 = vmatprep.subr.mxu0 0.0
    %v2694 = vand.u32 %v2045, 4294901760
    %v2695 = vsub.f32 %v2045, %v2694
    %v2696 = vand.u32 %v2695, 4294901760
    %2697 = vmatpush1.msra.mxu0 %v2696
    %2698 = vmatprep.subr.mxu0 0.0
    %v2699 = vand.u32 %v2149, 4294901760
    %v2700 = vsub.f32 %v2149, %v2699
    %v2701 = vand.u32 %v2700, 4294901760
    %2702 = vmatpush1.msra.mxu0 %v2701
    %2703 = vmatprep.subr.mxu0 0.0
    %v2704 = vand.u32 %v2253, 4294901760
    %v2705 = vsub.f32 %v2253, %v2704
    %v2706 = vand.u32 %v2705, 4294901760
    %2707 = vmatpush1.msra.mxu0 %v2706
    %2708 = vmatprep.subr.mxu0 0.0
    %v2709 = vand.u32 %v2357, 4294901760
    %v2710 = vsub.f32 %v2357, %v2709
    %v2711 = vand.u32 %v2710, 4294901760
    %2712 = vmatpush1.msra.mxu0 %v2711
    %2713 = vmatprep.subr.mxu0 0.0
    %2714 = vmatpush1.msra.mxu0 0.0
    %2715 = vmatprep.subr.mxu0 0.0
    %2716 = vmatpush1.msra.mxu0 0.0
    %2717 = vmatprep.subr.mxu0 0.0
    %2718 = vmatpush1.msra.mxu0 0.0
    %2719 = vmatprep.subr.mxu0 0.0
    %2720 = vmatpush1.msra.mxu0 0.0
    %2721 = vmatprep.subr.mxu0 0.0
    %2722 = vmatpush1.msra.mxu0 0.0
    %2723 = vmatprep.subr.mxu0 0.0
    %2724 = vmatpush1.msra.mxu0 0.0
    %2725 = vmatprep.subr.mxu0 0.0
    %2726 = vmatpush1.msra.mxu0 0.0
    %2727 = vmatprep.subr.mxu0 0.0
    %2728 = vmatpush1.msra.mxu0 0.0
    %2729 = vmatprep.subr.mxu0 0.0
    %2730 = vmatpush1.msra.mxu0 0.0
    %2731 = vmatprep.subr.mxu0 0.0
    %2732 = vmatpush1.msra.mxu0 0.0
    %2733 = vmatprep.subr.mxu0 0.0
    %2734 = vmatpush1.msra.mxu0 0.0
    %2735 = vmatprep.subr.mxu0 0.0
    %2736 = vmatpush1.msra.mxu0 0.0
    %2737 = vmatprep.subr.mxu0 0.0
    %2738 = vmatpush1.msra.mxu0 0.0
    %2739 = vmatprep.subr.mxu0 0.0
    %2740 = vmatpush1.msra.mxu0 0.0
    %2741 = vmatprep.subr.mxu0 0.0
    %2742 = vmatpush1.msra.mxu0 0.0
    %2743 = vmatprep.subr.mxu0 0.0
    %2744 = vmatpush1.msra.mxu0 0.0
    %2745 = vmatprep.subr.mxu0 0.0
    %2746 = vmatpush1.msra.mxu0 0.0
    %2747 = vmatprep.subr.mxu0 0.0
    %2748 = vmatpush1.msra.mxu0 0.0
    %2749 = vmatprep.subr.mxu0 0.0
    %2750 = vmatpush1.msra.mxu0 0.0
    %2751 = vmatprep.subr.mxu0 0.0
    %2752 = vmatpush1.msra.mxu0 0.0
    %2753 = vmatprep.subr.mxu0 0.0
    %2754 = vmatpush1.msra.mxu0 0.0
    %2755 = vmatprep.subr.mxu0 0.0
    %2756 = vmatpush1.msra.mxu0 0.0
    %2757 = vmatprep.subr.mxu0 0.0
    %2758 = vmatpush1.msra.mxu0 0.0
    %2759 = vmatprep.subr.mxu0 0.0
    %2760 = vmatpush1.msra.mxu0 0.0
    %2761 = vmatprep.subr.mxu0 0.0
    %2762 = vmatpush1.msra.mxu0 0.0
    %2763 = vmatprep.subr.mxu0 0.0
    %2764 = vmatpush1.msra.mxu0 0.0
    %2765 = vmatprep.subr.mxu0 0.0
    %2766 = vmatpush1.msra.mxu0 0.0
    %2767 = vmatprep.subr.mxu0 0.0
    %2768 = vmatpush1.msra.mxu0 0.0
    %2769 = vmatprep.mubr.f32.mxu0 0.0
    %v2770 = vand.u32 %v2364, 4294901760
    %2771 = vmatmul.mubr.f32.gmra.mrb[0].mxu0 %v2770
    %v2772 = vpop.f32.mrb[0].mxu0
    %v2773 = vadd.f32 %v2690, %v2772
    %v2774 = vpop.f32.mrb[0].mxu0
    %2775 = vdwg.mxu0
    %2776 = vmatprep.subr.mxu0 0.0
    %v2777 = vand.u32 %v2045, 4294901760
    %2778 = vmatpush1.msra.mxu0 %v2777
    %2779 = vmatprep.subr.mxu0 0.0
    %v2780 = vand.u32 %v2149, 4294901760
    %2781 = vmatpush1.msra.mxu0 %v2780
    %2782 = vmatprep.subr.mxu0 0.0
    %v2783 = vand.u32 %v2253, 4294901760
    %2784 = vmatpush1.msra.mxu0 %v2783
    %2785 = vmatprep.subr.mxu0 0.0
    %v2786 = vand.u32 %v2357, 4294901760
    %2787 = vmatpush1.msra.mxu0 %v2786
    %2788 = vmatprep.subr.mxu0 0.0
    %2789 = vmatpush1.msra.mxu0 0.0
    %2790 = vmatprep.subr.mxu0 0.0
    %2791 = vmatpush1.msra.mxu0 0.0
    %2792 = vmatprep.subr.mxu0 0.0
    %2793 = vmatpush1.msra.mxu0 0.0
    %2794 = vmatprep.subr.mxu0 0.0
    %2795 = vmatpush1.msra.mxu0 0.0
    %2796 = vmatprep.subr.mxu0 0.0
    %2797 = vmatpush1.msra.mxu0 0.0
    %2798 = vmatprep.subr.mxu0 0.0
    %2799 = vmatpush1.msra.mxu0 0.0
    %2800 = vmatprep.subr.mxu0 0.0
    %2801 = vmatpush1.msra.mxu0 0.0
    %2802 = vmatprep.subr.mxu0 0.0
    %2803 = vmatpush1.msra.mxu0 0.0
    %2804 = vmatprep.subr.mxu0 0.0
    %2805 = vmatpush1.msra.mxu0 0.0
    %2806 = vmatprep.subr.mxu0 0.0
    %2807 = vmatpush1.msra.mxu0 0.0
    %2808 = vmatprep.subr.mxu0 0.0
    %2809 = vmatpush1.msra.mxu0 0.0
    %2810 = vmatprep.subr.mxu0 0.0
    %2811 = vmatpush1.msra.mxu0 0.0
    %2812 = vmatprep.subr.mxu0 0.0
    %2813 = vmatpush1.msra.mxu0 0.0
    %2814 = vmatprep.subr.mxu0 0.0
    %2815 = vmatpush1.msra.mxu0 0.0
    %2816 = vmatprep.subr.mxu0 0.0
    %2817 = vmatpush1.msra.mxu0 0.0
    %2818 = vmatprep.subr.mxu0 0.0
    %2819 = vmatpush1.msra.mxu0 0.0
    %2820 = vmatprep.subr.mxu0 0.0
    %2821 = vmatpush1.msra.mxu0 0.0
    %2822 = vmatprep.subr.mxu0 0.0
    %2823 = vmatpush1.msra.mxu0 0.0
    %2824 = vmatprep.subr.mxu0 0.0
    %2825 = vmatpush1.msra.mxu0 0.0
    %2826 = vmatprep.subr.mxu0 0.0
    %2827 = vmatpush1.msra.mxu0 0.0
    %2828 = vmatprep.subr.mxu0 0.0
    %2829 = vmatpush1.msra.mxu0 0.0
    %2830 = vmatprep.subr.mxu0 0.0
    %2831 = vmatpush1.msra.mxu0 0.0
    %2832 = vmatprep.subr.mxu0 0.0
    %2833 = vmatpush1.msra.mxu0 0.0
    %2834 = vmatprep.subr.mxu0 0.0
    %2835 = vmatpush1.msra.mxu0 0.0
    %2836 = vmatprep.subr.mxu0 0.0
    %2837 = vmatpush1.msra.mxu0 0.0
    %2838 = vmatprep.subr.mxu0 0.0
    %2839 = vmatpush1.msra.mxu0 0.0
    %2840 = vmatprep.subr.mxu0 0.0
    %2841 = vmatpush1.msra.mxu0 0.0
    %2842 = vmatprep.subr.mxu0 0.0
    %2843 = vmatpush1.msra.mxu0 0.0
    %2844 = vmatprep.mubr.f32.mxu0 0.0
    %v2845 = vand.u32 %v2364, 4294901760
    %2846 = vmatmul.mubr.f32.gmra.mrb[0].mxu0 %v2845
    %v2847 = vpop.f32.mrb[0].mxu0
    %v2848 = vadd.f32 %v2773, %v2847
    %v2849 = vpop.f32.mrb[0].mxu0
    %2850 = vdwg.mxu0
    %v2851 = vand.u32 2147483647, %v2848
    %vm2852 = vcmp.le.f32.partialorder %v2851, 0.7853982
    %vm2853 = vcmp.lt.s32.totalorder %v2848, 0
    %v2854 = vand.u32 %v2848, 2139095040
    %v2855 = vshrl.u32 %v2854, 23
    %v2856 = vsub.s32 %v2855, 127
    %v2857 = vand.u32 2147483647, %v2848
    %v2858 = vand.u32 %v2857, 8388607
    %v2859 = vor.u32 %v2858, 8388608
    %v2860 = vsub.s32 0, %v2859
    %v2861 = vadd.s32 %v2856, 1
    %vm2862 = vcmp.gt.s32.totalorder %v2861, 0
    %v2863 = vsel %vm2862, %v2861, 0
    %v2864 = vshrl.u32 %v2863, 5
    %v2865 = vand.u32 %v2863, 31
    %v2866 = vsub.s32 32, %v2865
    %v2867 = vshrl.u32 683565275, %v2866
    %v2868 = vshll.u32 683565275, %v2865
    %v2869 = vshrl.u32 2475754826, %v2866
    %v2870 = vor.u32 %v2868, %v2869
    %v2871 = vshll.u32 2475754826, %v2865
    %v2872 = vshrl.u32 2131351028, %v2866
    %v2873 = vor.u32 %v2871, %v2872
    %v2874 = vshll.u32 2131351028, %v2865
    %v2875 = vshrl.u32 2102212464, %v2866
    %v2876 = vor.u32 %v2874, %v2875
    %v2877 = vshll.u32 2102212464, %v2865
    %v2878 = vshrl.u32 920167782, %v2866
    %v2879 = vor.u32 %v2877, %v2878
    %v2880 = vshll.u32 920167782, %v2865
    %v2881 = vshrl.u32 1326507024, %v2866
    %v2882 = vor.u32 %v2880, %v2881
    %vm2883 = vcmp.lt.s32.totalorder %v2864, 1
    %vm2884 = vcmp.lt.s32.totalorder %v2864, 2
    %vm2885 = vcmp.lt.s32.totalorder %v2864, 3
    %vm2886 = vcmp.lt.s32.totalorder %v2864, 4
    %v2887 = vsel %vm2883, %v2867, %v2870
    %v2888 = vsel %vm2886, %v2876, 2102212464
    %v2889 = vsel %vm2885, %v2873, %v2888
    %v2890 = vsel %vm2884, %v2887, %v2889
    %v2891 = vsel %vm2883, %v2870, %v2873
    %v2892 = vsel %vm2886, %v2879, 920167782
    %v2893 = vsel %vm2885, %v2876, %v2892
    %v2894 = vsel %vm2884, %v2891, %v2893
    %v2895 = vsel %vm2883, %v2873, %v2876
    %v2896 = vsel %vm2886, %v2882, 1326507024
    %v2897 = vsel %vm2885, %v2879, %v2896
    %v2898 = vsel %vm2884, %v2895, %v2897
    %v2899 = vshll.u32 %v2859, 8
    %v2900 = vmul.u32.u64.compose %v2899, %v2898
    %v2901 = vextract.low.u32 %v2900
    %v2902 = vextract.high.u32 %v2900
    %v2903 = vmul.u32.u64.compose %v2899, %v2894
    %v2904 = vextract.low.u32 %v2903
    %v2905 = vextract.high.u32 %v2903
    %v2906 = vmul.u32 %v2899, %v2890
    %v2907 = vadd.s32 %v2902, %v2904
    %vm2908 = vc.u32 %v2902, %v2904
    %v2909 = vadd.s32 %v2905, 1
    %v2910 = vsel %vm2908, %v2909, %v2905
    %v2911 = vadd.s32 %v2906, %v2910
    %v2912 = vadd.s32 %v2911, 536870912
    %v2913 = vshrl.u32 %v2912, 30
    %v2914 = vshll.u32 %v2913, 30
    %v2915 = vsub.s32 %v2911, %v2914
    %vm2916 = vcmp.lt.s32.totalorder %v2915, 0
    %v2917 = vsub.s32 0, %v2915
    %v2918 = vsel %vm2916, %v2917, %v2915
    %v2919 = vclz %v2918
    %v2920 = vsub.s32 %v2919, 2
    %vm2921 = vcmp.gt.s32.totalorder 0, %v2920
    %v2922 = vsel %vm2921, 0, %v2920
    %v2923 = vsub.s32 32, %v2922
    %v2924 = vshll.u32 %v2915, %v2922
    %v2925 = vshrl.u32 %v2907, %v2923
    %v2926 = vor.u32 %v2924, %v2925
    %v2927 = vsub.s32 4294967266, %v2922
    %v2928 = vadd.s32 %v2927, 127
    %v2929 = vshll.u32 %v2928, 23
    %v2930 = vor.u32 4788187, %v2929
    %v2931 = vand.u32 2147483647, %v2930
    %v2933 = vcvt.s32.f32 %v2926
    %v2934 = vmul.f32 %v2933, %v2931
    %v2935 = vxor.u32 %v2934, 2147483648
    %v2936 = vsel %vm2853, %v2935, %v2934
    %v2937 = vsub.s32 4, %v2913
    %v2938 = vsel %vm2853, %v2937, %v2913
    %v2939 = vsel %vm2852, %v2848, %v2936
    %v2940 = vsel %vm2852, 0, %v2938
    %v2941 = vcosq.f32.pop %v2939
    %v2942 = vsinq.f32.pop %v2939
    %vm2943 = vweird.f32 %v2848
    %v2944 = vadd.s32 %v2940, 3
    %v2945 = vand.u32 %v2944, 3
    %vm2946 = vcmp.lt.s32.totalorder %v2945, 2
    %vm2947 = vcmp.eq.s32.totalorder %v2945, 0
    %v2948 = vxor.u32 %v2942, 2147483648
    %v2949 = vsel %vm2947, %v2941, %v2948
    %vm2950 = vcmp.eq.s32.totalorder %v2945, 2
    %v2951 = vxor.u32 %v2941, 2147483648
    %v2952 = vsel %vm2950, %v2951, %v2942
    %v2953 = vsel %vm2946, %v2949, %v2952
    %v2954 = vsel %vm2943, nan, %v2953
    %v2955 = vmul.f32 %v2954, 0.06816568
    %v2956 = vadd.f32 %v2955, 0.09183432
    %2957 = vst [vmem:[#allocation2] sm:$0x1] %v2956
    // Predicated region
    $region10: #{tpu_custom_call.1} parent=1 // pred_check
      _
    $region11: #{tpu_custom_call.1} parent=1 // pred_check_branch
      %2959 = sbr.rel (0) target = $region13
    $region12: #{tpu_custom_call.1} parent=1 // pred_region
      %s2961 = ssub.s32 16, 16
      %2962 = vsyncadd [#allocation3], %s2961
      %s2964 = sshll.u32 [#allocation2], 4
      %s2965 = int_to_ptr.vmem [resolvable:$true] %s2964
      %2967 = dma.vmem_to_hbm [thread:$0]  %s2965, 16, %s2, [#allocation3]
    $region13: #{tpu_custom_call.1} parent=1 // pred_fallthru
      _
    // Predicated region
    $region14: #{tpu_custom_call.1} parent=1 // pred_check
      _
    $region15: #{tpu_custom_call.1} parent=1 // pred_check_branch
      %2969 = sbr.rel (0) target = $region17
    $region16: #{tpu_custom_call.1} parent=1 // pred_region
      %2970 = dma.done [#allocation3], 16
    $region17: #{tpu_custom_call.1} parent=1 // pred_fallthru
      _
    %2971 = vsyncpa [#allocation3], 1

</llo_original>
